<compile_context>
chip_gen: v5e
topology: v5e:2x2
jax: 0.10.0
libtpu: 0.0.40
codegen_flags: <defaults>
</compile_context>

<pallas_src>
from functools import partial
from types import SimpleNamespace

import numpy as np
import jax
import jax.numpy as jnp
from jax.experimental import pallas as pl
from jax.experimental.pallas import tpu as pltpu

ACT_DTYPE = jnp.bfloat16          # activations / weights on the MXU


def _vmem_limit_bytes():
    """~3/4 of physical VMEM, capped at 100 MiB (v5e/v6e: ~96 MiB, v7x: ~48 MiB)."""
    cap = None
    try:
        cap = int(pltpu.get_tpu_info().vmem_capacity_bytes)
    except Exception:
        cap = None
    if not cap:
        try:
            kind = jax.devices()[0].device_kind.lower()
        except Exception:
            kind = ""
        cap = 64 * 1024 * 1024 if "v7" in kind else 128 * 1024 * 1024
    return max(32 * 1024 * 1024, min((cap * 3) // 4, 100 * 1024 * 1024))


_VMEM_LIMIT = _vmem_limit_bytes()

# Matmul tile targets (bf16 operands, f32 accumulator).  Tiles are auto-shrunk to
# divisors of the problem so small layers never pad.
_BM_T, _BN_T, _BK_T = 1024, 512, 1024
# conv3x3 slab-kernel tile targets (output rows / output channels)
_BR_T, _BCOUT_T = 256, 256


def _ceil_to(x, m):
    return ((x + m - 1) // m) * m


def _pick_div(n, target, mult):
    """Largest block b <= target with b % mult == 0 and n % b == 0.
    Returns n itself ("full dim") when n <= target; None if no such divisor exists."""
    if n <= target:
        return n
    b = (target // mult) * mult
    while b >= mult:
        if n % b == 0:
            return b
        b -= mult
    return None


# --------------------------------------------------------------------------------------
# Fused matmul kernel:  (M,K)bf16 @ (K,Cout)bf16  ->  scale/shift (+residual) (+ReLU)
# --------------------------------------------------------------------------------------

def _epilogue(acc, ss_ref, r_ref, relu):
    y = acc * ss_ref[0:1, :] + ss_ref[1:2, :]
    if r_ref is not None:
        y = y + r_ref[...].astype(jnp.float32)
    if relu:
        y = jnp.maximum(y, 0.0)
    return y


def _make_mm_kernel_multi(relu, has_res):
    """K is split over the last grid axis -> f32 VMEM scratch accumulator."""
    if has_res:
        def kernel(a_ref, b_ref, ss_ref, r_ref, o_ref, acc_ref):
            @pl.when(pl.program_id(2) == 0)
            def _():
                acc_ref[...] = jnp.zeros_like(acc_ref)
            acc_ref[...] += jnp.dot(a_ref[...], b_ref[...],
                                    preferred_element_type=jnp.float32)

            @pl.when(pl.program_id(2) == pl.num_programs(2) - 1)
            def _():
                o_ref[...] = _epilogue(acc_ref[...], ss_ref, r_ref, relu).astype(o_ref.dtype)
    else:
        def kernel(a_ref, b_ref, ss_ref, o_ref, acc_ref):
            @pl.when(pl.program_id(2) == 0)
            def _():
                acc_ref[...] = jnp.zeros_like(acc_ref)
            acc_ref[...] += jnp.dot(a_ref[...], b_ref[...],
                                    preferred_element_type=jnp.float32)

            @pl.when(pl.program_id(2) == pl.num_programs(2) - 1)
            def _():
                o_ref[...] = _epilogue(acc_ref[...], ss_ref, None, relu).astype(o_ref.dtype)
    return kernel


def _make_mm_kernel_single(relu, has_res):
    """Whole K in one step: dot -> epilogue -> store, no scratch / init / readback."""
    if has_res:
        def kernel(a_ref, b_ref, ss_ref, r_ref, o_ref):
            acc = jnp.dot(a_ref[...], b_ref[...], preferred_element_type=jnp.float32)
            o_ref[...] = _epilogue(acc, ss_ref, r_ref, relu).astype(o_ref.dtype)
    else:
        def kernel(a_ref, b_ref, ss_ref, o_ref):
            acc = jnp.dot(a_ref[...], b_ref[...], preferred_element_type=jnp.float32)
            o_ref[...] = _epilogue(acc, ss_ref, None, relu).astype(o_ref.dtype)
    return kernel


def _mm_fused(a, b, ss, res=None, relu=True):
    """Tiled MXU matmul with fused per-output-channel scale/shift (folded BN),
    optional residual add and ReLU in the epilogue.

    a: (M, K) bf16;  b: (K, Cout) bf16;  ss: (2, Cout) f32 = [scale; shift];
    res: optional (M, Cout) bf16 added before the ReLU.  Returns (M, Cout) bf16.
    """
    M, K = a.shape
    Cout = b.shape[1]

    bm = _pick_div(M, _BM_T, 16)               # bf16 packs 16 rows / sublane pair
    m_pad = 0
    if bm is None:                             # rare: M > target and not a multiple of 16
        m_pad = _ceil_to(M, 16) - M
        a = jnp.pad(a, ((0, m_pad), (0, 0)))
        if res is not None:
            res = jnp.pad(res, ((0, m_pad), (0, 0)))
        bm = _pick_div(M + m_pad, _BM_T, 16)
    Mp = M + m_pad

    bk = _pick_div(K, _BK_T, 128) or K         # full-K block when no 128-multiple divides
    bn = _pick_div(Cout, _BN_T, 128) or Cout
    has_res = res is not None

    if bk == K:
        # single contraction step (covers every 1x1 conv with K <= 1024 and the stem)
        in_specs = [
            pl.BlockSpec((bm, K), lambda i, j: (i, 0)),
            pl.BlockSpec((K, bn), lambda i, j: (0, j)),
            pl.BlockSpec((2, bn), lambda i, j: (0, j)),
        ]
        operands = [a, b, ss]
        if has_res:
            in_specs.append(pl.BlockSpec((bm, bn), lambda i, j: (i, j)))
            operands.append(res)
        out = pl.pallas_call(
            _make_mm_kernel_single(relu, has_res),
            out_shape=jax.ShapeDtypeStruct((Mp, Cout), ACT_DTYPE),
            grid=(Mp // bm, Cout // bn),
            in_specs=in_specs,
            out_specs=pl.BlockSpec((bm, bn), lambda i, j: (i, j)),
            compiler_params=pltpu.CompilerParams(
                dimension_semantics=("parallel", "parallel"),
                vmem_limit_bytes=_VMEM_LIMIT),
        )(*operands)
    else:
        in_specs = [
            pl.BlockSpec((bm, bk), lambda i, j, k: (i, k)),
            pl.BlockSpec((bk, bn), lambda i, j, k: (k, j)),
            pl.BlockSpec((2, bn), lambda i, j, k: (0, j)),
        ]
        operands = [a, b, ss]
        if has_res:
            in_specs.append(pl.BlockSpec((bm, bn), lambda i, j, k: (i, j)))
            operands.append(res)
        out = pl.pallas_call(
            _make_mm_kernel_multi(relu, has_res),
            out_shape=jax.ShapeDtypeStruct((Mp, Cout), ACT_DTYPE),
            grid=(Mp // bm, Cout // bn, K // bk),
            in_specs=in_specs,
            out_specs=pl.BlockSpec((bm, bn), lambda i, j, k: (i, j)),
            scratch_shapes=[pltpu.VMEM((bm, bn), jnp.float32)],
            compiler_params=pltpu.CompilerParams(
                dimension_semantics=("parallel", "parallel", "arbitrary"),
                vmem_limit_bytes=_VMEM_LIMIT),
        )(*operands)
    if m_pad:
        out = out[:M]
    return out


# --------------------------------------------------------------------------------------
# General conv (1x1 direct, KxK via bf16 im2col) + fused BN/(residual)/ReLU
# --------------------------------------------------------------------------------------

@partial(jax.jit, static_argnames=("stride", "pad", "relu"))
def conv2d_fused(x, w, ss, res=None, *, stride=1, pad=0, relu=True):
    """x: (N,H,W,Cin) bf16, w: (KH,KW,Cin,Cout) bf16, ss: (2,Cout) f32."""
    N, H, W, Cin = x.shape
    KH, KW, _, Cout = w.shape
    if pad:
        x = jnp.pad(x, ((0, 0), (pad, pad), (pad, pad), (0, 0)))
    Hp, Wp = H + 2 * pad, W + 2 * pad
    oh = (Hp - KH) // stride + 1
    ow = (Wp - KW) // stride + 1
    if KH == 1 and KW == 1:
        patches = x[:, ::stride, ::stride, :][:, :oh, :ow, :] if stride > 1 else x
    else:
        # TODO(synk): only the 7x7 stem, the three stride-2 3x3 convs and the Cin=64
        # layer1 3x3s take this (bf16) im2col path; the remaining stride-1 3x3 convs use
        # the im2col-free slab kernel below.
        cols = []
        for i in range(KH):
            for j in range(KW):
                cols.append(x[:, i:i + stride * oh:stride, j:j + stride * ow:stride, :])
        patches = jnp.concatenate(cols, axis=-1)
    a = patches.reshape(N * oh * ow, KH * KW * Cin)
    b = w.reshape(KH * KW * Cin, Cout)
    res_flat = None if res is None else res.reshape(N * oh * ow, Cout)
    y = _mm_fused(a, b, ss, res_flat, relu)
    return y.reshape(N, oh, ow, Cout)


# --------------------------------------------------------------------------------------
# Stride-1 3x3 conv without HBM im2col (fused BN + ReLU), row-tiled
# --------------------------------------------------------------------------------------

def _make_conv3x3_kernel(br, wp, relu):
    def kernel(x_ref, w_ref, ss_ref, o_ref):
        # x_ref : (1, slab_rows, Cin) bf16 -- one image's zero-padded activation,
        #         spatially flattened so each tap is a constant-offset row slice.
        # w_ref : (9, Cin, bcout) bf16; ss_ref: (2, bcout) f32; o_ref: (br, bcout) bf16
        r0 = pl.program_id(2) * br
        acc = jnp.zeros(o_ref.shape, jnp.float32)
        for kh in range(3):
            for kw in range(3):
                d = kh * wp + kw
                a = x_ref[0, pl.ds(r0 + d, br), :]           # direct bf16 tap slice
                acc = acc + jnp.dot(a, w_ref[kh * 3 + kw],
                                    preferred_element_type=jnp.float32)
        y = acc * ss_ref[0:1, :] + ss_ref[1:2, :]
        if relu:
            y = jnp.maximum(y, 0.0)
        o_ref[...] = y.astype(o_ref.dtype)
    return kernel


@partial(jax.jit, static_argnames=("relu",))
def conv3x3_s1_fused(x, w, ss, relu=True):
    """3x3 conv, stride 1, pad 1, + fused BN(+ReLU), no im2col materialization.

    The padded activation is flattened per image to (slab_rows, Cin); each of the 9 taps
    is a shifted (br, Cin) slice of that slab, accumulated on the MXU.  Output rows are
    tiled with a grid axis (br rows per step).  The kernel computes H x Wp positions
    (Wp = padded width); the couple of garbage columns are sliced off afterwards.
    """
    N, H, W, Cin = x.shape
    Cout = w.shape[-1]
    # choose right padding so rows = H * Wp is sublane aligned (multiple of 8)
    r = 1
    while (H * (W + 1 + r)) % 8 != 0:
        r += 1
    Wp = W + 1 + r
    rows = H * Wp
    # pad: (top=1, bottom=2) x (left=1, right=r); the extra bottom row keeps every shifted
    # tap slice inside the flattened slab.
    xp = jnp.pad(x, ((0, 0), (1, 2), (1, r), (0, 0)))
    X = xp.reshape(N, (H + 3) * Wp, Cin)
    wt = w.reshape(9, Cin, Cout)

    bcout = _pick_div(Cout, _BCOUT_T, 128) or Cout
    br = _pick_div(rows, _BR_T, 16) or _pick_div(rows, _BR_T, 8) or rows
    nrb = rows // br

    out = pl.pallas_call(
        _make_conv3x3_kernel(br, Wp, relu),
        out_shape=jax.ShapeDtypeStruct((N * rows, Cout), ACT_DTYPE),
        grid=(N, Cout // bcout, nrb),
        in_specs=[
            pl.BlockSpec((1, (H + 3) * Wp, Cin), lambda n, j, rr: (n, 0, 0)),
            pl.BlockSpec((9, Cin, bcout), lambda n, j, rr: (0, 0, j)),
            pl.BlockSpec((2, bcout), lambda n, j, rr: (0, j)),
        ],
        out_specs=pl.BlockSpec((br, bcout), lambda n, j, rr: (n * nrb + rr, j)),
        compiler_params=pltpu.CompilerParams(
            dimension_semantics=("parallel", "parallel", "parallel"),
            vmem_limit_bytes=_VMEM_LIMIT),
    )(X, wt, ss)
    return out.reshape(N, H, Wp, Cout)[:, :, :W, :]


# --------------------------------------------------------------------------------------
# Max pool 3x3/2/1 via 4 even/odd phases (no 9x HBM window stacking)
# --------------------------------------------------------------------------------------

def _maxpool_kernel(ee_ref, eo_ref, oe_ref, oo_ref, o_ref):
    oh, ow = o_ref.shape[1], o_ref.shape[2]
    ee = ee_ref[0]
    eo = eo_ref[0]
    oe = oe_ref[0]
    oo = oo_ref[0]
    m = jnp.maximum(ee[0:oh, 0:ow], ee[0:oh, 1:ow + 1])
    m = jnp.maximum(m, ee[1:oh + 1, 0:ow])
    m = jnp.maximum(m, ee[1:oh + 1, 1:ow + 1])
    m = jnp.maximum(m, eo[0:oh, 0:ow])
    m = jnp.maximum(m, eo[1:oh + 1, 0:ow])
    m = jnp.maximum(m, oe[0:oh, 0:ow])
    m = jnp.maximum(m, oe[0:oh, 1:ow + 1])
    m = jnp.maximum(m, oo[0:oh, 0:ow])
    o_ref[0] = m


@partial(jax.jit, static_argnames=("ksize", "stride", "pad"))
def maxpool2d(x, ksize=3, stride=2, pad=1):
    assert ksize == 3 and stride == 2 and pad == 1
    N, H, W, C = x.shape
    oh = (H + 2 * pad - ksize) // stride + 1
    ow = (W + 2 * pad - ksize) // stride + 1
    Hpp, Wpp = 2 * (oh + 1), 2 * (ow + 1)
    xp = jnp.pad(x, ((0, 0), (pad, Hpp - H - pad), (pad, Wpp - W - pad), (0, 0)),
                 constant_values=-jnp.inf)
    # even/odd phase split (total HBM footprint == padded input, vs 9x before)
    ph = xp.reshape(N, oh + 1, 2, ow + 1, 2, C)
    ee = ph[:, :, 0, :, 0, :]
    eo = ph[:, :, 0, :, 1, :]
    oe = ph[:, :, 1, :, 0, :]
    oo = ph[:, :, 1, :, 1, :]
    phase_spec = pl.BlockSpec((1, oh + 1, ow + 1, C), lambda n: (n, 0, 0, 0))
    return pl.pallas_call(
        _maxpool_kernel,
        out_shape=jax.ShapeDtypeStruct((N, oh, ow, C), x.dtype),
        grid=(N,),
        in_specs=[phase_spec, phase_spec, phase_spec, phase_spec],
        out_specs=pl.BlockSpec((1, oh, ow, C), lambda n: (n, 0, 0, 0)),
        compiler_params=pltpu.CompilerParams(
            dimension_semantics=("parallel",),
            vmem_limit_bytes=_VMEM_LIMIT),
    )(ee, eo, oe, oo)


# --------------------------------------------------------------------------------------
# Adaptive average pool (batched, single call) -> already (N, bins, C)
# --------------------------------------------------------------------------------------

def _adaptive_pool_matrix(H, W, out_h, out_w):
    """PyTorch AdaptiveAvgPool2d semantics as a binary (bins, H*W) selection matrix plus
    per-bin element counts (so the bf16 matmul stays exact and 1/cnt is applied in f32)."""
    sel = np.zeros((out_h * out_w, H * W), dtype=np.float32)
    cnt = np.zeros((out_h * out_w,), dtype=np.float32)
    for oi in range(out_h):
        hs, he = (oi * H) // out_h, -(-((oi + 1) * H) // out_h)
        for oj in range(out_w):
            ws, we = (oj * W) // out_w, -(-((oj + 1) * W) // out_w)
            cnt[oi * out_w + oj] = (he - hs) * (we - ws)
            for h in range(hs, he):
                sel[oi * out_w + oj, h * W + ws:h * W + we] = 1.0
    return sel, cnt


def _adaptive_pool_kernel(p_ref, s_ref, f_ref, o_ref):
    acc = jnp.dot(p_ref[...], f_ref[0], preferred_element_type=jnp.float32)
    o_ref[0] = acc * s_ref[...]


@partial(jax.jit, static_argnames=("out_h", "out_w"))
def adaptive_avg_pool(x, out_h, out_w):
    """x: (N, H, W, C) -> (N, out_h*out_w, C) f32 (== flatten(2)+transpose(1,2))."""
    N, H, W, C = x.shape
    bins, hw = out_h * out_w, H * W
    bins_p, hw_p = _ceil_to(bins, 8), _ceil_to(hw, 8)
    sel, cnt = _adaptive_pool_matrix(H, W, out_h, out_w)
    selp = np.zeros((bins_p, hw_p), np.float32)
    selp[:bins, :hw] = sel
    scale = np.zeros((bins_p, 1), np.float32)
    scale[:bins, 0] = 1.0 / cnt
    selp = jnp.asarray(selp).astype(ACT_DTYPE)       # binary -> exact in bf16
    scale = jnp.asarray(scale)
    feat = jnp.pad(x.reshape(N, hw, C), ((0, 0), (0, hw_p - hw), (0, 0)))
    out = pl.pallas_call(
        _adaptive_pool_kernel,
        out_shape=jax.ShapeDtypeStruct((N, bins_p, C), jnp.float32),
        grid=(N,),
        in_specs=[
            pl.BlockSpec((bins_p, hw_p), lambda n: (0, 0)),
            pl.BlockSpec((bins_p, 1), lambda n: (0, 0)),
            pl.BlockSpec((1, hw_p, C), lambda n: (n, 0, 0)),
        ],
        out_specs=pl.BlockSpec((1, bins_p, C), lambda n: (n, 0, 0)),
        compiler_params=pltpu.CompilerParams(
            dimension_semantics=("parallel",),
            vmem_limit_bytes=_VMEM_LIMIT),
    )(selp, scale, feat)
    return out[:, :bins, :]


# --------------------------------------------------------------------------------------
# ResNet-152 (torchvision layout: Bottleneck x [3, 8, 36, 3]) + ImageEncoder head
# --------------------------------------------------------------------------------------

def _conv_w(key, kh, kw, cin, cout):
    return (0.02 * jax.random.normal(key, (kh, kw, cin, cout), jnp.float32)).astype(ACT_DTYPE)


def _bn_ss(c, eps=1e-5):
    # eval-mode BatchNorm folded into (scale, shift); default torchvision init.
    gamma = jnp.ones((c,), jnp.float32)
    beta = jnp.zeros((c,), jnp.float32)
    mean = jnp.zeros((c,), jnp.float32)
    var = jnp.ones((c,), jnp.float32)
    scale = gamma / jnp.sqrt(var + eps)
    shift = beta - mean * scale
    return jnp.stack([scale, shift], axis=0)     # (2, C) f32


def init_resnet152_params(key):
    cnt = [0]

    def nk():
        cnt[0] += 1
        return jax.random.fold_in(key, cnt[0])

    params = {"conv1_w": _conv_w(nk(), 7, 7, 3, 64), "bn1_ss": _bn_ss(64)}
    layer_cfg = [(64, 3, 1), (128, 8, 2), (256, 36, 2), (512, 3, 2)]
    inplanes = 64
    layers = []
    for planes, nblocks, stride in layer_cfg:
        blocks = []
        for b in range(nblocks):
            s = stride if b == 0 else 1
            outplanes = planes * 4
            blk = {
                "stride": s,
                "w1": _conv_w(nk(), 1, 1, inplanes, planes), "ss1": _bn_ss(planes),
                "w2": _conv_w(nk(), 3, 3, planes, planes),   "ss2": _bn_ss(planes),
                "w3": _conv_w(nk(), 1, 1, planes, outplanes), "ss3": _bn_ss(outplanes),
                "down_w": None, "down_ss": None,
            }
            if s != 1 or inplanes != outplanes:
                blk["down_w"] = _conv_w(nk(), 1, 1, inplanes, outplanes)
                blk["down_ss"] = _bn_ss(outplanes)
            blocks.append(blk)
            inplanes = outplanes
        layers.append(blocks)
    params["layers"] = layers
    return params


def bottleneck_forward(x, p):
    s = p["stride"]
    if p["down_w"] is not None:
        identity = conv2d_fused(x, p["down_w"], p["down_ss"],
                                stride=s, pad=0, relu=False)
    else:
        identity = x
    out = conv2d_fused(x, p["w1"], p["ss1"], stride=1, pad=0, relu=True)
    if s == 1 and p["w2"].shape[2] >= 128:
        # im2col-free slab kernel (Cin>=128 keeps the MXU contraction deep enough)
        out = conv3x3_s1_fused(out, p["w2"], p["ss2"], relu=True)
    else:
        # stride-2 3x3s and the Cin=64 layer1 3x3s: im2col path (K = 9*Cin on the MXU)
        out = conv2d_fused(out, p["w2"], p["ss2"], stride=s, pad=1, relu=True)
    # conv3 + BN + residual-add + ReLU fused into one kernel epilogue
    out = conv2d_fused(out, p["w3"], p["ss3"], identity, stride=1, pad=0, relu=True)
    return out


_POOL_SHAPES = {1: (1, 1), 2: (2, 1), 3: (3, 1), 5: (5, 1), 7: (7, 1),
                4: (2, 2), 6: (3, 2), 8: (4, 2), 9: (3, 3)}


def image_encoder_forward(params, x_nchw, args):
    # NCHW (PyTorch convention) -> NHWC bf16 for the kernels.
    x = jnp.transpose(x_nchw, (0, 2, 3, 1)).astype(ACT_DTYPE)

    # stem: 7x7/2 conv + BN + ReLU (fused), then 3x3/2 maxpool
    x = conv2d_fused(x, params["conv1_w"], params["bn1_ss"], stride=2, pad=3, relu=True)
    x = maxpool2d(x, ksize=3, stride=2, pad=1)

    # layer1..layer4
    for blocks in params["layers"]:
        for blk in blocks:
            x = bottleneck_forward(x, blk)

    # adaptive pool -> flatten(start_dim=2) -> transpose(1, 2)
    # TODO(synk): AdaptiveMaxPool2d ('max' pool type) not implemented; demo uses 'avg'.
    assert args.img_embed_pool_type == "avg"
    out_h, out_w = _POOL_SHAPES[args.num_image_embeds]
    return adaptive_avg_pool(x, out_h, out_w)


if __name__ == "__main__":
    args = SimpleNamespace(img_embed_pool_type="avg", num_image_embeds=3)

    key = jax.random.PRNGKey(0)
    k_params, k_x = jax.random.split(key)
    params = init_resnet152_params(k_params)

    # small deterministic input, NCHW like the PyTorch module expects
    x = jax.random.normal(k_x, (2, 3, 64, 64), jnp.float32)

    out = image_encoder_forward(params, x, args)
    out = jax.block_until_ready(out)

    assert out.shape == (2, args.num_image_embeds, 2048), out.shape
    assert bool(jnp.all(jnp.isfinite(out)))
    print("KERNEL_OK")
</pallas_src>

<mosaic_0001>
module attributes {stable_mosaic.version = 11 : i64} {
  func.func @kernel(%arg0: i32, %arg1: i32, %arg2: memref<1024x147xbf16, #tpu.memory_space<vmem>>, %arg3: memref<147x64xbf16, #tpu.memory_space<vmem>>, %arg4: memref<2x64xf32, #tpu.memory_space<vmem>>, %arg5: memref<1024x64xbf16, #tpu.memory_space<vmem>>) attributes {dimension_semantics = [#tpu.dimension_semantics<parallel>, #tpu.dimension_semantics<parallel>], iteration_bounds = array<i64: 2, 1>, scalar_prefetch = 0 : i64, scratch_operands = 0 : i64, tpu.core_type = #tpu.core_type<tc>, window_params = [{transform_indices = @transform_0, window_bounds = array<i64: 1024, 147>}, {transform_indices = @transform_1, window_bounds = array<i64: 147, 64>}, {transform_indices = @transform_2, window_bounds = array<i64: 2, 64>}, {transform_indices = @transform_3, window_bounds = array<i64: 1024, 64>}]} {
    %c0 = arith.constant 0 : index
    %c0_0 = arith.constant 0 : index
    %0 = vector.load %arg2[%c0, %c0_0] : memref<1024x147xbf16, #tpu.memory_space<vmem>>, vector<1024x147xbf16>
    %c0_1 = arith.constant 0 : index
    %c0_2 = arith.constant 0 : index
    %1 = vector.load %arg3[%c0_1, %c0_2] : memref<147x64xbf16, #tpu.memory_space<vmem>>, vector<147x64xbf16>
    %cst = arith.constant dense<0.000000e+00> : vector<1024x64xf32>
    %2 = tpu.matmul %0, %1, %cst {dimension_numbers = #tpu.dot_dimension_numbers<[1], [0], [0], [1], [0, 0, 1, 1], [], []>} : vector<1024x147xbf16>, vector<147x64xbf16>, vector<1024x64xf32> -> vector<1024x64xf32>
    %c0_3 = arith.constant 0 : index
    %c0_4 = arith.constant 0 : index
    %3 = vector.load %arg4[%c0_3, %c0_4] : memref<2x64xf32, #tpu.memory_space<vmem>>, vector<1x64xf32>
    %4 = vector.broadcast %3 : vector<1x64xf32> to vector<1024x64xf32>
    %5 = arith.mulf %2, %4 : vector<1024x64xf32>
    %c1 = arith.constant 1 : index
    %c0_5 = arith.constant 0 : index
    %6 = vector.load %arg4[%c1, %c0_5] : memref<2x64xf32, #tpu.memory_space<vmem>>, vector<1x64xf32>
    %7 = vector.broadcast %6 : vector<1x64xf32> to vector<1024x64xf32>
    %8 = arith.addf %5, %7 : vector<1024x64xf32>
    %cst_6 = arith.constant 0.000000e+00 : f32
    %9 = vector.broadcast %cst_6 : f32 to vector<1024x64xf32>
    %10 = arith.maximumf %8, %9 : vector<1024x64xf32>
    %11 = arith.truncf %10 : vector<1024x64xf32> to vector<1024x64xbf16>
    %c0_7 = arith.constant 0 : index
    %c0_8 = arith.constant 0 : index
    %12 = vector.load %arg5[%c0_7, %c0_8] : memref<1024x64xbf16, #tpu.memory_space<vmem>>, vector<1024x64xbf16>
    tpu.vector_store %arg5[%c0_7, %c0_8], %11 {strides = array<i32>} : memref<1024x64xbf16, #tpu.memory_space<vmem>>, vector<1024x64xbf16>,
    return
  }
  func.func @transform_0(%arg0: i32, %arg1: i32) -> (i32, i32) {
    %c0_i32 = arith.constant 0 : i32
    %c0_i32_0 = arith.constant 0 : i32
    return %arg0, %c0_i32 : i32, i32
  }
  func.func @transform_1(%arg0: i32, %arg1: i32) -> (i32, i32) {
    %c0_i32 = arith.constant 0 : i32
    %c0_i32_0 = arith.constant 0 : i32
    return %c0_i32, %arg1 : i32, i32
  }
  func.func @transform_2(%arg0: i32, %arg1: i32) -> (i32, i32) {
    %c0_i32 = arith.constant 0 : i32
    %c0_i32_0 = arith.constant 0 : i32
    return %c0_i32, %arg1 : i32, i32
  }
  func.func @transform_3(%arg0: i32, %arg1: i32) -> (i32, i32) {
    %c0_i32 = arith.constant 0 : i32
    return %arg0, %arg1 : i32, i32
  }
}

</mosaic_0001>

<llo_original>
// kernel: conv2d_fused.1
$region0: #{conv2d_fused.1}
  #allocation0 [shape = 'u32[]', space=smem, size = 0x4, offset = 0x4, fixed_abs, tag = 'smem constant byte address 0x4 - core index']
  #allocation1 [shape = 'u32[72,128]{1,0:T(1,128)}', space=vmem, size = 0x9000, scoped, tag = 'internal scratch']
  %s0 = inlined_call_operand.vmem [shape: bf16[2048,147], index: 0, kind: input, shape index: {}]
  %s1 = inlined_call_operand.vmem [shape: bf16[147,64], index: 1, kind: input, shape index: {}]
  %s2 = inlined_call_operand.vmem [shape: f32[2,64], index: 2, kind: input, shape index: {}]
  %s3 = inlined_call_operand.hbm [shape: bf16[2048,64], index: 3, kind: output, shape index: {}]
  %s4 = sld [smem:[#allocation0]]
  $region45: #{conv2d_fused.1} parent=0
    _
  %s6 = ssub.s32 1, %s4
  %s7 = scalar_select 0, %s6, %s4
  $region1: #{conv2d_fused.1} parent=0
    #allocation2 [shape = 'u8[524288]{0}', space=vmem, size = 0x80000, scoped, tag = 'output window, operand 0']
    #allocation3 [shape = 's32[2]{0}', space=sflag, size = 0x8, scoped, tag = 'scoped memory for conv2d_fused.1']
    %8 = vsyncpa [#allocation3], 0
    %s9 = scalar_lea.sflag [#allocation3], 1
    %10 = vsyncpa %s9, 0
    loop: start=0, step=1, limit=4
    $region2: #{conv2d_fused.1} parent=1 // loop_pre_header
      _
    $region3: #{conv2d_fused.1} parent=1 // loop_header
      %s12 = sphi 0, %s16
      %p13 = scmp.ge.s32.totalorder %s12, 4
      %s19 = sphi 0, %s31
      %s20 = sphi 0, %s27
      %s21 = sphi 0, %s19
      %s22 = sphi 0, %s20
      %s23 = sphi 0, %s21
      %s24 = sphi 0, %s22
      %s34 = sphi 0, %s36
      %s37 = sphi 0, %s34
      %s38 = sphi 0, %s37
      %s54 = sphi 0, %s38
      %s60 = sphi 0, %s62
      %s63 = sphi 0, %s60
      %s64 = sphi 0, %s63
      %s80 = sphi 0, %s64
      %s86 = sphi 0, %s88
      %s89 = sphi 0, %s86
      %s90 = sphi 0, %s89
      %s106 = sphi 0, %s90
      %s114 = sphi 0, %s116
      %s117 = sphi 0, %s114
      %s118 = sphi 0, %s117
      %s134 = sphi 0, %s118
    $region4: #{conv2d_fused.1} parent=1 // loop_header_branch
      %15 = sbr.rel (%p13) target = $region8
    $region5: #{conv2d_fused.1} parent=1 // loop_body
      %s17 = ssub.s32 %s12, 1
      %s18 = ssub.s32 %s12, 2
      %s25 = sadd.s32 1, %s20
      %p26 = scmp.ge.s32.totalorder %s25, 1
      %s27 = scalar_select %p26, 0, %s25
      %s28 = sadd.s32 1, %s19
      %s29 = scalar_select %p26, %s28, %s19
      %p30 = scmp.ge.s32.totalorder %s29, 2
      %s31 = scalar_select %p30, 0, %s29
      %s32 = ssub.s32 %s19, %s31
      %p33 = scmp.eq.s32.totalorder %s32, 0
      %s35 = sadd.s32 %s34, 1
      %s36 = scalar_select %p33, %s34, %s35
      %p39 = pneg %p33
      %p40 = scmp.eq.s32.totalorder %s12, 1
      %p41 = por %p39, %p40
      %p42 = scmp.ne.s32.totalorder %s34, %s37
      %p43 = scmp.eq.s32.totalorder %s12, 0
      %p44 = por %p42, %p43
      %p45 = scmp.ne.s32.totalorder %s34, %s37
      %p46 = scmp.eq.s32.totalorder %s17, 1
      %p47 = por %p45, %p46
      %p48 = scmp.ne.s32.totalorder %s37, %s38
      %p49 = scmp.eq.s32.totalorder %s17, 0
      %p50 = por %p48, %p49
      %p51 = scmp.ne.s32.totalorder %s37, %s38
      %p52 = scmp.eq.s32.totalorder %s18, 1
      %p53 = por %p51, %p52
      %p55 = scmp.ne.s32.totalorder %s38, %s54
      %p56 = scmp.eq.s32.totalorder %s18, 0
      %p57 = por %p55, %p56
      %s58 = ssub.s32 %s20, %s27
      %p59 = scmp.eq.s32.totalorder %s58, 0
      %s61 = sadd.s32 %s60, 1
      %s62 = scalar_select %p59, %s60, %s61
      %p65 = pneg %p59
      %p66 = scmp.eq.s32.totalorder %s12, 1
      %p67 = por %p65, %p66
      %p68 = scmp.ne.s32.totalorder %s60, %s63
      %p69 = scmp.eq.s32.totalorder %s12, 0
      %p70 = por %p68, %p69
      %p71 = scmp.ne.s32.totalorder %s60, %s63
      %p72 = scmp.eq.s32.totalorder %s17, 1
      %p73 = por %p71, %p72
      %p74 = scmp.ne.s32.totalorder %s63, %s64
      %p75 = scmp.eq.s32.totalorder %s17, 0
      %p76 = por %p74, %p75
      %p77 = scmp.ne.s32.totalorder %s63, %s64
      %p78 = scmp.eq.s32.totalorder %s18, 1
      %p79 = por %p77, %p78
      %p81 = scmp.ne.s32.totalorder %s64, %s80
      %p82 = scmp.eq.s32.totalorder %s18, 0
      %p83 = por %p81, %p82
      %s84 = ssub.s32 %s20, %s27
      %p85 = scmp.eq.s32.totalorder %s84, 0
      %s87 = sadd.s32 %s86, 1
      %s88 = scalar_select %p85, %s86, %s87
      %p91 = pneg %p85
      %p92 = scmp.eq.s32.totalorder %s12, 1
      %p93 = por %p91, %p92
      %p94 = scmp.ne.s32.totalorder %s86, %s89
      %p95 = scmp.eq.s32.totalorder %s12, 0
      %p96 = por %p94, %p95
      %p97 = scmp.ne.s32.totalorder %s86, %s89
      %p98 = scmp.eq.s32.totalorder %s17, 1
      %p99 = por %p97, %p98
      %p100 = scmp.ne.s32.totalorder %s89, %s90
      %p101 = scmp.eq.s32.totalorder %s17, 0
      %p102 = por %p100, %p101
      %p103 = scmp.ne.s32.totalorder %s89, %s90
      %p104 = scmp.eq.s32.totalorder %s18, 1
      %p105 = por %p103, %p104
      %p107 = scmp.ne.s32.totalorder %s90, %s106
      %p108 = scmp.eq.s32.totalorder %s18, 0
      %p109 = por %p107, %p108
      %s110 = ssub.s32 %s19, %s31
      %s111 = ssub.s32 %s20, %s27
      %s112 = sor.u32 %s110, %s111
      %p113 = scmp.eq.s32.totalorder %s112, 0
      %s115 = sadd.s32 %s114, 1
      %s116 = scalar_select %p113, %s114, %s115
      %p119 = pneg %p113
      %p120 = scmp.eq.s32.totalorder %s12, 1
      %p121 = por %p119, %p120
      %p122 = scmp.ne.s32.totalorder %s114, %s117
      %p123 = scmp.eq.s32.totalorder %s12, 0
      %p124 = por %p122, %p123
      %p125 = scmp.ne.s32.totalorder %s114, %s117
      %p126 = scmp.eq.s32.totalorder %s17, 1
      %p127 = por %p125, %p126
      %p128 = scmp.ne.s32.totalorder %s117, %s118
      %p129 = scmp.eq.s32.totalorder %s17, 0
      %p130 = por %p128, %p129
      %p131 = scmp.ne.s32.totalorder %s117, %s118
      %p132 = scmp.eq.s32.totalorder %s18, 1
      %p133 = por %p131, %p132
      %p135 = scmp.ne.s32.totalorder %s118, %s134
      %p136 = scmp.eq.s32.totalorder %s18, 0
      %p137 = por %p135, %p136
      %p138 = scmp.le.s32.totalorder 1, %s12
      %p139 = scmp.lt.s32.totalorder %s12, 3
      %p140 = pnand %p138, %p139
      %p141 = pneg %p140
      // Predicated region
      $region9: #{conv2d_fused.1} parent=5 // pred_check
        _
      $region10: #{conv2d_fused.1} parent=5 // pred_check_branch
        %143 = sbr.rel (%p140) target = $region12
      $region11: #{conv2d_fused.1} parent=5 // pred_region
        %s144 = ssub.s32 %s12, 1
        // Predicated region
        $region13: #{conv2d_fused.1} parent=11 // pred_check
          %p145 = pneg %p76
        $region14: #{conv2d_fused.1} parent=11 // pred_check_branch
          %147 = sbr.rel (%p145) target = $region16
        $region15: #{conv2d_fused.1} parent=11 // pred_region
          %p148 = scmp.lt.s32.totalorder %s22, 0
          %s149 = scalar_select %p148, %s22, 0
          %s150 = smul.addr %s149, 4
          %s151 = scalar_lea.vmem %s1, %s150
        $region16: #{conv2d_fused.1} parent=11 // pred_fallthru
          _
        // Predicated region
        $region17: #{conv2d_fused.1} parent=11 // pred_check
          %p152 = pneg %p102
        $region18: #{conv2d_fused.1} parent=11 // pred_check_branch
          %154 = sbr.rel (%p152) target = $region20
        $region19: #{conv2d_fused.1} parent=11 // pred_region
          %p155 = scmp.lt.s32.totalorder %s22, 0
          %s156 = scalar_select %p155, %s22, 0
          %s157 = smul.addr %s156, 2
          %s158 = scalar_lea.vmem %s2, %s157
        $region20: #{conv2d_fused.1} parent=11 // pred_fallthru
          _
      $region12: #{conv2d_fused.1} parent=5 // pred_fallthru
        _
      %p159 = scmp.lt.s32.totalorder %s12, 2
      // Predicated region
      $region21: #{conv2d_fused.1} parent=5 // pred_check
        %p160 = pneg %p159
      $region22: #{conv2d_fused.1} parent=5 // pred_check_branch
        %162 = sbr.rel (%p160) target = $region24
      $region23: #{conv2d_fused.1} parent=5 // pred_region
        // Predicated region
        $region25: #{conv2d_fused.1} parent=23 // pred_check
          %p163 = pneg %p44
        $region26: #{conv2d_fused.1} parent=23 // pred_check_branch
          %165 = sbr.rel (%p163) target = $region28
        $region27: #{conv2d_fused.1} parent=23 // pred_region
          %s166 = smul.u32 128, %s19
          %p167 = scmp.lt.s32.totalorder %s166, 255
          %s168 = scalar_select %p167, %s166, 255
          %s169 = smul.addr %s168, 2
          %s170 = smul.addr %s169, 4
          %s171 = scalar_lea.vmem %s0, %s170
          %s172 = smul.u32 128, %s19
        $region28: #{conv2d_fused.1} parent=23 // pred_fallthru
          _
      $region24: #{conv2d_fused.1} parent=5 // pred_fallthru
        _
      %p173 = scmp.le.s32.totalorder 1, %s12
      %p174 = scmp.lt.s32.totalorder %s12, 3
      %p175 = pnand %p173, %p174
      %p176 = pneg %p175
      // Predicated region
      $region29: #{conv2d_fused.1} parent=5 // pred_check
        _
      $region30: #{conv2d_fused.1} parent=5 // pred_check_branch
        %178 = sbr.rel (%p175) target = $region32
      $region31: #{conv2d_fused.1} parent=5 // pred_region
        %s179 = ssub.s32 %s12, 1
        %s180 = smul.u32 128, %s21
        %p181 = scmp.lt.s32.totalorder %s180, 255
        %s182 = scalar_select %p181, %s180, 255
        %s183 = smul.addr %s182, 2
        %s184 = smul.addr %s183, 4
        %s185 = scalar_lea.vmem %s0, %s184
        %p186 = pneg %p50
        %p187 = pneg %p47
        %p188 = scmp.lt.s32.totalorder %s22, 0
        %s189 = scalar_select %p188, %s22, 0
        %s190 = smul.addr %s189, 4
        %s191 = scalar_lea.vmem %s1, %s190
        %p192 = pneg %p76
        %p193 = pneg %p73
        %p194 = scmp.lt.s32.totalorder %s22, 0
        %s195 = scalar_select %p194, %s22, 0
        %s196 = smul.addr %s195, 2
        %s197 = scalar_lea.vmem %s2, %s196
        %p198 = pneg %p102
        %p199 = pneg %p99
        %p200 = pneg %p130
        %p201 = pneg %p127
        %s202 = sand.u32 %s117, 1
        %s203 = scalar_lea.sflag [#allocation3], %s202
        %s204 = sand.u32 %s117, 1
        %s205 = smul.addr %s204, 512
        %s206 = scalar_lea.vmem [#allocation2], %s205
        %s207 = smul.u32 128, %s21
        %p208 = scmp.lt.s32.totalorder %s207, 255
        %s209 = scalar_select %p208, %s207, 255
        %s210 = smul.addr %s209, 2
        %s211 = smul.addr %s210, 4
        %s212 = scalar_lea.vmem %s0, %s211
        %s213 = smul.u32 128, %s21
        %p214 = scmp.lt.s32.totalorder %s22, 0
        %s215 = scalar_select %p214, %s22, 0
        %s216 = smul.addr %s215, 4
        %s217 = scalar_lea.vmem %s1, %s216
        %p218 = scmp.lt.s32.totalorder %s22, 0
        %s219 = scalar_select %p218, %s22, 0
        %s220 = smul.addr %s219, 2
        %s221 = scalar_lea.vmem %s2, %s220
        %s222 = smul.u32 128, %s21
        %v224 = vld [vmem:[%s212] sm:$0xff]
        %v225 = vld [vmem:[%s212 + $0x8] sm:$0xff]
        %v226 = vld [vmem:[%s212 + $0x10] sm:$0xff]
        %v227 = vld [vmem:[%s212 + $0x18] sm:$0xff]
        %v228 = vld [vmem:[%s212 + $0x20] sm:$0xff]
        %v229 = vld [vmem:[%s212 + $0x28] sm:$0xff]
        %v230 = vld [vmem:[%s212 + $0x30] sm:$0xff]
        %v231 = vld [vmem:[%s212 + $0x38] sm:$0xff]
        %v232 = vld [vmem:[%s212 + $0x40] sm:$0xff]
        %v233 = vld [vmem:[%s212 + $0x48] sm:$0xff]
        %v234 = vld [vmem:[%s212 + $0x50] sm:$0xff]
        %v235 = vld [vmem:[%s212 + $0x58] sm:$0xff]
        %v236 = vld [vmem:[%s212 + $0x60] sm:$0xff]
        %v237 = vld [vmem:[%s212 + $0x68] sm:$0xff]
        %v238 = vld [vmem:[%s212 + $0x70] sm:$0xff]
        %v239 = vld [vmem:[%s212 + $0x78] sm:$0xff]
        %v240 = vld [vmem:[%s212 + $0x80] sm:$0xff]
        %v241 = vld [vmem:[%s212 + $0x88] sm:$0xff]
        %v242 = vld [vmem:[%s212 + $0x90] sm:$0xff]
        %v243 = vld [vmem:[%s212 + $0x98] sm:$0xff]
        %v244 = vld [vmem:[%s212 + $0xa0] sm:$0xff]
        %v245 = vld [vmem:[%s212 + $0xa8] sm:$0xff]
        %v246 = vld [vmem:[%s212 + $0xb0] sm:$0xff]
        %v247 = vld [vmem:[%s212 + $0xb8] sm:$0xff]
        %v248 = vld [vmem:[%s212 + $0xc0] sm:$0xff]
        %v249 = vld [vmem:[%s212 + $0xc8] sm:$0xff]
        %v250 = vld [vmem:[%s212 + $0xd0] sm:$0xff]
        %v251 = vld [vmem:[%s212 + $0xd8] sm:$0xff]
        %v252 = vld [vmem:[%s212 + $0xe0] sm:$0xff]
        %v253 = vld [vmem:[%s212 + $0xe8] sm:$0xff]
        %v254 = vld [vmem:[%s212 + $0xf0] sm:$0xff]
        %v255 = vld [vmem:[%s212 + $0xf8] sm:$0xff]
        %v256 = vld [vmem:[%s212 + $0x100] sm:$0xff]
        %v257 = vld [vmem:[%s212 + $0x108] sm:$0xff]
        %v258 = vld [vmem:[%s212 + $0x110] sm:$0xff]
        %v259 = vld [vmem:[%s212 + $0x118] sm:$0xff]
        %v260 = vld [vmem:[%s212 + $0x120] sm:$0xff]
        %v261 = vld [vmem:[%s212 + $0x128] sm:$0xff]
        %v262 = vld [vmem:[%s212 + $0x130] sm:$0xff]
        %v263 = vld [vmem:[%s212 + $0x138] sm:$0xff]
        %v264 = vld [vmem:[%s212 + $0x140] sm:$0xff]
        %v265 = vld [vmem:[%s212 + $0x148] sm:$0xff]
        %v266 = vld [vmem:[%s212 + $0x150] sm:$0xff]
        %v267 = vld [vmem:[%s212 + $0x158] sm:$0xff]
        %v268 = vld [vmem:[%s212 + $0x160] sm:$0xff]
        %v269 = vld [vmem:[%s212 + $0x168] sm:$0xff]
        %v270 = vld [vmem:[%s212 + $0x170] sm:$0xff]
        %v271 = vld [vmem:[%s212 + $0x178] sm:$0xff]
        %v272 = vld [vmem:[%s212 + $0x180] sm:$0xff]
        %v273 = vld [vmem:[%s212 + $0x188] sm:$0xff]
        %v274 = vld [vmem:[%s212 + $0x190] sm:$0xff]
        %v275 = vld [vmem:[%s212 + $0x198] sm:$0xff]
        %v276 = vld [vmem:[%s212 + $0x1a0] sm:$0xff]
        %v277 = vld [vmem:[%s212 + $0x1a8] sm:$0xff]
        %v278 = vld [vmem:[%s212 + $0x1b0] sm:$0xff]
        %v279 = vld [vmem:[%s212 + $0x1b8] sm:$0xff]
        %v280 = vld [vmem:[%s212 + $0x1c0] sm:$0xff]
        %v281 = vld [vmem:[%s212 + $0x1c8] sm:$0xff]
        %v282 = vld [vmem:[%s212 + $0x1d0] sm:$0xff]
        %v283 = vld [vmem:[%s212 + $0x1d8] sm:$0xff]
        %v284 = vld [vmem:[%s212 + $0x1e0] sm:$0xff]
        %v285 = vld [vmem:[%s212 + $0x1e8] sm:$0xff]
        %v286 = vld [vmem:[%s212 + $0x1f0] sm:$0xff]
        %v287 = vld [vmem:[%s212 + $0x1f8] sm:$0xff]
        %v288 = vld [vmem:[%s212 + $0x200] sm:$0xff]
        %v289 = vld [vmem:[%s212 + $0x208] sm:$0xff]
        %v290 = vld [vmem:[%s212 + $0x210] sm:$0xff]
        %v291 = vld [vmem:[%s212 + $0x218] sm:$0xff]
        %v292 = vld [vmem:[%s212 + $0x220] sm:$0xff]
        %v293 = vld [vmem:[%s212 + $0x228] sm:$0xff]
        %v294 = vld [vmem:[%s212 + $0x230] sm:$0xff]
        %v295 = vld [vmem:[%s212 + $0x238] sm:$0xff]
        %v296 = vld [vmem:[%s212 + $0x240] sm:$0xff]
        %v297 = vld [vmem:[%s212 + $0x248] sm:$0xff]
        %v298 = vld [vmem:[%s212 + $0x250] sm:$0xff]
        %v299 = vld [vmem:[%s212 + $0x258] sm:$0xff]
        %v300 = vld [vmem:[%s212 + $0x260] sm:$0xff]
        %v301 = vld [vmem:[%s212 + $0x268] sm:$0xff]
        %v302 = vld [vmem:[%s212 + $0x270] sm:$0xff]
        %v303 = vld [vmem:[%s212 + $0x278] sm:$0xff]
        %v304 = vld [vmem:[%s212 + $0x280] sm:$0xff]
        %v305 = vld [vmem:[%s212 + $0x288] sm:$0xff]
        %v306 = vld [vmem:[%s212 + $0x290] sm:$0xff]
        %v307 = vld [vmem:[%s212 + $0x298] sm:$0xff]
        %v308 = vld [vmem:[%s212 + $0x2a0] sm:$0xff]
        %v309 = vld [vmem:[%s212 + $0x2a8] sm:$0xff]
        %v310 = vld [vmem:[%s212 + $0x2b0] sm:$0xff]
        %v311 = vld [vmem:[%s212 + $0x2b8] sm:$0xff]
        %v312 = vld [vmem:[%s212 + $0x2c0] sm:$0xff]
        %v313 = vld [vmem:[%s212 + $0x2c8] sm:$0xff]
        %v314 = vld [vmem:[%s212 + $0x2d0] sm:$0xff]
        %v315 = vld [vmem:[%s212 + $0x2d8] sm:$0xff]
        %v316 = vld [vmem:[%s212 + $0x2e0] sm:$0xff]
        %v317 = vld [vmem:[%s212 + $0x2e8] sm:$0xff]
        %v318 = vld [vmem:[%s212 + $0x2f0] sm:$0xff]
        %v319 = vld [vmem:[%s212 + $0x2f8] sm:$0xff]
        %v320 = vld [vmem:[%s212 + $0x300] sm:$0xff]
        %v321 = vld [vmem:[%s212 + $0x308] sm:$0xff]
        %v322 = vld [vmem:[%s212 + $0x310] sm:$0xff]
        %v323 = vld [vmem:[%s212 + $0x318] sm:$0xff]
        %v324 = vld [vmem:[%s212 + $0x320] sm:$0xff]
        %v325 = vld [vmem:[%s212 + $0x328] sm:$0xff]
        %v326 = vld [vmem:[%s212 + $0x330] sm:$0xff]
        %v327 = vld [vmem:[%s212 + $0x338] sm:$0xff]
        %v328 = vld [vmem:[%s212 + $0x340] sm:$0xff]
        %v329 = vld [vmem:[%s212 + $0x348] sm:$0xff]
        %v330 = vld [vmem:[%s212 + $0x350] sm:$0xff]
        %v331 = vld [vmem:[%s212 + $0x358] sm:$0xff]
        %v332 = vld [vmem:[%s212 + $0x360] sm:$0xff]
        %v333 = vld [vmem:[%s212 + $0x368] sm:$0xff]
        %v334 = vld [vmem:[%s212 + $0x370] sm:$0xff]
        %v335 = vld [vmem:[%s212 + $0x378] sm:$0xff]
        %v336 = vld [vmem:[%s212 + $0x380] sm:$0xff]
        %v337 = vld [vmem:[%s212 + $0x388] sm:$0xff]
        %v338 = vld [vmem:[%s212 + $0x390] sm:$0xff]
        %v339 = vld [vmem:[%s212 + $0x398] sm:$0xff]
        %v340 = vld [vmem:[%s212 + $0x3a0] sm:$0xff]
        %v341 = vld [vmem:[%s212 + $0x3a8] sm:$0xff]
        %v342 = vld [vmem:[%s212 + $0x3b0] sm:$0xff]
        %v343 = vld [vmem:[%s212 + $0x3b8] sm:$0xff]
        %v344 = vld [vmem:[%s212 + $0x3c0] sm:$0xff]
        %v345 = vld [vmem:[%s212 + $0x3c8] sm:$0xff]
        %v346 = vld [vmem:[%s212 + $0x3d0] sm:$0xff]
        %v347 = vld [vmem:[%s212 + $0x3d8] sm:$0xff]
        %v348 = vld [vmem:[%s212 + $0x3e0] sm:$0xff]
        %v349 = vld [vmem:[%s212 + $0x3e8] sm:$0xff]
        %v350 = vld [vmem:[%s212 + $0x3f0] sm:$0xff]
        %v351 = vld [vmem:[%s212 + $0x3f8] sm:$0xff]
        %v352 = vld [vmem:[%s217] sm:$0xf]
        %v353 = vld [vmem:[%s217 + $0x4] sm:$0xf]
        %v354 = vld [vmem:[%s217 + $0x8] sm:$0xf]
        %v355 = vld [vmem:[%s217 + $0xc] sm:$0xf]
        %v356 = vld [vmem:[%s217 + $0x10] sm:$0xf]
        %v357 = vld [vmem:[%s217 + $0x14] sm:$0xf]
        %v358 = vld [vmem:[%s217 + $0x18] sm:$0xf]
        %v359 = vld [vmem:[%s217 + $0x1c] sm:$0xf]
        %v360 = vld [vmem:[%s217 + $0x20] sm:$0xf]
        %v361 = vld [vmem:[%s217 + $0x24] sm:$0xf]
        %v362 = vld [vmem:[%s217 + $0x28] sm:$0xf]
        %v363 = vld [vmem:[%s217 + $0x2c] sm:$0xf]
        %v364 = vld [vmem:[%s217 + $0x30] sm:$0xf]
        %v365 = vld [vmem:[%s217 + $0x34] sm:$0xf]
        %v366 = vld [vmem:[%s217 + $0x38] sm:$0xf]
        %v367 = vld [vmem:[%s217 + $0x3c] sm:$0xf]
        %v368 = vld [vmem:[%s217 + $0x40] sm:$0xf]
        %v369 = vld [vmem:[%s217 + $0x44] sm:$0xf]
        %v370 = vld [vmem:[%s217 + $0x48] sm:$0x3]
        %v499 = vunpack.c.l.b16 %v224
        %v500 = vunpack.c.h.b16 %v224
        %v501 = vunpack.c.l.b16 %v225
        %v502 = vunpack.c.h.b16 %v225
        %v503 = vunpack.c.l.b16 %v226
        %v504 = vunpack.c.h.b16 %v226
        %v505 = vunpack.c.l.b16 %v227
        %v506 = vunpack.c.h.b16 %v227
        %v507 = vunpack.c.l.b16 %v228
        %v508 = vunpack.c.h.b16 %v228
        %v509 = vunpack.c.l.b16 %v229
        %v510 = vunpack.c.h.b16 %v229
        %v511 = vunpack.c.l.b16 %v230
        %v512 = vunpack.c.h.b16 %v230
        %v513 = vunpack.c.l.b16 %v231
        %v514 = vunpack.c.h.b16 %v231
        %v515 = vunpack.c.l.b16 %v232
        %v516 = vunpack.c.h.b16 %v232
        %v517 = vunpack.c.l.b16 %v233
        %v518 = vunpack.c.h.b16 %v233
        %v519 = vunpack.c.l.b16 %v234
        %v520 = vunpack.c.h.b16 %v234
        %v521 = vunpack.c.l.b16 %v235
        %v522 = vunpack.c.h.b16 %v235
        %v523 = vunpack.c.l.b16 %v236
        %v524 = vunpack.c.h.b16 %v236
        %v525 = vunpack.c.l.b16 %v237
        %v526 = vunpack.c.h.b16 %v237
        %v527 = vunpack.c.l.b16 %v238
        %v528 = vunpack.c.h.b16 %v238
        %v529 = vunpack.c.l.b16 %v239
        %v530 = vunpack.c.h.b16 %v239
        %v531 = vunpack.c.l.b16 %v240
        %v532 = vunpack.c.h.b16 %v240
        %v533 = vunpack.c.l.b16 %v241
        %v534 = vunpack.c.h.b16 %v241
        %v535 = vunpack.c.l.b16 %v242
        %v536 = vunpack.c.h.b16 %v242
        %v537 = vunpack.c.l.b16 %v243
        %v538 = vunpack.c.h.b16 %v243
        %v539 = vunpack.c.l.b16 %v244
        %v540 = vunpack.c.h.b16 %v244
        %v541 = vunpack.c.l.b16 %v245
        %v542 = vunpack.c.h.b16 %v245
        %v543 = vunpack.c.l.b16 %v246
        %v544 = vunpack.c.h.b16 %v246
        %v545 = vunpack.c.l.b16 %v247
        %v546 = vunpack.c.h.b16 %v247
        %v547 = vunpack.c.l.b16 %v248
        %v548 = vunpack.c.h.b16 %v248
        %v549 = vunpack.c.l.b16 %v249
        %v550 = vunpack.c.h.b16 %v249
        %v551 = vunpack.c.l.b16 %v250
        %v552 = vunpack.c.h.b16 %v250
        %v553 = vunpack.c.l.b16 %v251
        %v554 = vunpack.c.h.b16 %v251
        %v555 = vunpack.c.l.b16 %v252
        %v556 = vunpack.c.h.b16 %v252
        %v557 = vunpack.c.l.b16 %v253
        %v558 = vunpack.c.h.b16 %v253
        %v559 = vunpack.c.l.b16 %v254
        %v560 = vunpack.c.h.b16 %v254
        %v561 = vunpack.c.l.b16 %v255
        %v562 = vunpack.c.h.b16 %v255
        %v563 = vunpack.c.l.b16 %v256
        %v564 = vunpack.c.h.b16 %v256
        %v565 = vunpack.c.l.b16 %v257
        %v566 = vunpack.c.h.b16 %v257
        %v567 = vunpack.c.l.b16 %v258
        %v568 = vunpack.c.h.b16 %v258
        %v569 = vunpack.c.l.b16 %v259
        %v570 = vunpack.c.h.b16 %v259
        %v571 = vunpack.c.l.b16 %v260
        %v572 = vunpack.c.h.b16 %v260
        %v573 = vunpack.c.l.b16 %v261
        %v574 = vunpack.c.h.b16 %v261
        %v575 = vunpack.c.l.b16 %v262
        %v576 = vunpack.c.h.b16 %v262
        %v577 = vunpack.c.l.b16 %v263
        %v578 = vunpack.c.h.b16 %v263
        %v579 = vunpack.c.l.b16 %v264
        %v580 = vunpack.c.h.b16 %v264
        %v581 = vunpack.c.l.b16 %v265
        %v582 = vunpack.c.h.b16 %v265
        %v583 = vunpack.c.l.b16 %v266
        %v584 = vunpack.c.h.b16 %v266
        %v585 = vunpack.c.l.b16 %v267
        %v586 = vunpack.c.h.b16 %v267
        %v587 = vunpack.c.l.b16 %v268
        %v588 = vunpack.c.h.b16 %v268
        %v589 = vunpack.c.l.b16 %v269
        %v590 = vunpack.c.h.b16 %v269
        %v591 = vunpack.c.l.b16 %v270
        %v592 = vunpack.c.h.b16 %v270
        %v593 = vunpack.c.l.b16 %v271
        %v594 = vunpack.c.h.b16 %v271
        %v595 = vunpack.c.l.b16 %v272
        %v596 = vunpack.c.h.b16 %v272
        %v597 = vunpack.c.l.b16 %v273
        %v598 = vunpack.c.h.b16 %v273
        %v599 = vunpack.c.l.b16 %v274
        %v600 = vunpack.c.h.b16 %v274
        %v601 = vunpack.c.l.b16 %v275
        %v602 = vunpack.c.h.b16 %v275
        %v603 = vunpack.c.l.b16 %v276
        %v604 = vunpack.c.h.b16 %v276
        %v605 = vunpack.c.l.b16 %v277
        %v606 = vunpack.c.h.b16 %v277
        %v607 = vunpack.c.l.b16 %v278
        %v608 = vunpack.c.h.b16 %v278
        %v609 = vunpack.c.l.b16 %v279
        %v610 = vunpack.c.h.b16 %v279
        %v611 = vunpack.c.l.b16 %v280
        %v612 = vunpack.c.h.b16 %v280
        %v613 = vunpack.c.l.b16 %v281
        %v614 = vunpack.c.h.b16 %v281
        %v615 = vunpack.c.l.b16 %v282
        %v616 = vunpack.c.h.b16 %v282
        %v617 = vunpack.c.l.b16 %v283
        %v618 = vunpack.c.h.b16 %v283
        %v619 = vunpack.c.l.b16 %v284
        %v620 = vunpack.c.h.b16 %v284
        %v621 = vunpack.c.l.b16 %v285
        %v622 = vunpack.c.h.b16 %v285
        %v623 = vunpack.c.l.b16 %v286
        %v624 = vunpack.c.h.b16 %v286
        %v625 = vunpack.c.l.b16 %v287
        %v626 = vunpack.c.h.b16 %v287
        %v627 = vunpack.c.l.b16 %v288
        %v628 = vunpack.c.h.b16 %v288
        %v629 = vunpack.c.l.b16 %v289
        %v630 = vunpack.c.h.b16 %v289
        %v631 = vunpack.c.l.b16 %v290
        %v632 = vunpack.c.h.b16 %v290
        %v633 = vunpack.c.l.b16 %v291
        %v634 = vunpack.c.h.b16 %v291
        %v635 = vunpack.c.l.b16 %v292
        %v636 = vunpack.c.h.b16 %v292
        %v637 = vunpack.c.l.b16 %v293
        %v638 = vunpack.c.h.b16 %v293
        %v639 = vunpack.c.l.b16 %v294
        %v640 = vunpack.c.h.b16 %v294
        %v641 = vunpack.c.l.b16 %v295
        %v642 = vunpack.c.h.b16 %v295
        %v643 = vunpack.c.l.b16 %v296
        %v644 = vunpack.c.h.b16 %v296
        %v645 = vunpack.c.l.b16 %v297
        %v646 = vunpack.c.h.b16 %v297
        %v647 = vunpack.c.l.b16 %v298
        %v648 = vunpack.c.h.b16 %v298
        %v649 = vunpack.c.l.b16 %v299
        %v650 = vunpack.c.h.b16 %v299
        %v651 = vunpack.c.l.b16 %v300
        %v652 = vunpack.c.h.b16 %v300
        %v653 = vunpack.c.l.b16 %v301
        %v654 = vunpack.c.h.b16 %v301
        %v655 = vunpack.c.l.b16 %v302
        %v656 = vunpack.c.h.b16 %v302
        %v657 = vunpack.c.l.b16 %v303
        %v658 = vunpack.c.h.b16 %v303
        %v659 = vunpack.c.l.b16 %v304
        %v660 = vunpack.c.h.b16 %v304
        %v661 = vunpack.c.l.b16 %v305
        %v662 = vunpack.c.h.b16 %v305
        %v663 = vunpack.c.l.b16 %v306
        %v664 = vunpack.c.h.b16 %v306
        %v665 = vunpack.c.l.b16 %v307
        %v666 = vunpack.c.h.b16 %v307
        %v667 = vunpack.c.l.b16 %v308
        %v668 = vunpack.c.h.b16 %v308
        %v669 = vunpack.c.l.b16 %v309
        %v670 = vunpack.c.h.b16 %v309
        %v671 = vunpack.c.l.b16 %v310
        %v672 = vunpack.c.h.b16 %v310
        %v673 = vunpack.c.l.b16 %v311
        %v674 = vunpack.c.h.b16 %v311
        %v675 = vunpack.c.l.b16 %v312
        %v676 = vunpack.c.h.b16 %v312
        %v677 = vunpack.c.l.b16 %v313
        %v678 = vunpack.c.h.b16 %v313
        %v679 = vunpack.c.l.b16 %v314
        %v680 = vunpack.c.h.b16 %v314
        %v681 = vunpack.c.l.b16 %v315
        %v682 = vunpack.c.h.b16 %v315
        %v683 = vunpack.c.l.b16 %v316
        %v684 = vunpack.c.h.b16 %v316
        %v685 = vunpack.c.l.b16 %v317
        %v686 = vunpack.c.h.b16 %v317
        %v687 = vunpack.c.l.b16 %v318
        %v688 = vunpack.c.h.b16 %v318
        %v689 = vunpack.c.l.b16 %v319
        %v690 = vunpack.c.h.b16 %v319
        %v691 = vunpack.c.l.b16 %v320
        %v692 = vunpack.c.h.b16 %v320
        %v693 = vunpack.c.l.b16 %v321
        %v694 = vunpack.c.h.b16 %v321
        %v695 = vunpack.c.l.b16 %v322
        %v696 = vunpack.c.h.b16 %v322
        %v697 = vunpack.c.l.b16 %v323
        %v698 = vunpack.c.h.b16 %v323
        %v699 = vunpack.c.l.b16 %v324
        %v700 = vunpack.c.h.b16 %v324
        %v701 = vunpack.c.l.b16 %v325
        %v702 = vunpack.c.h.b16 %v325
        %v703 = vunpack.c.l.b16 %v326
        %v704 = vunpack.c.h.b16 %v326
        %v705 = vunpack.c.l.b16 %v327
        %v706 = vunpack.c.h.b16 %v327
        %v707 = vunpack.c.l.b16 %v328
        %v708 = vunpack.c.h.b16 %v328
        %v709 = vunpack.c.l.b16 %v329
        %v710 = vunpack.c.h.b16 %v329
        %v711 = vunpack.c.l.b16 %v330
        %v712 = vunpack.c.h.b16 %v330
        %v713 = vunpack.c.l.b16 %v331
        %v714 = vunpack.c.h.b16 %v331
        %v715 = vunpack.c.l.b16 %v332
        %v716 = vunpack.c.h.b16 %v332
        %v717 = vunpack.c.l.b16 %v333
        %v718 = vunpack.c.h.b16 %v333
        %v719 = vunpack.c.l.b16 %v334
        %v720 = vunpack.c.h.b16 %v334
        %v721 = vunpack.c.l.b16 %v335
        %v722 = vunpack.c.h.b16 %v335
        %v723 = vunpack.c.l.b16 %v336
        %v724 = vunpack.c.h.b16 %v336
        %v725 = vunpack.c.l.b16 %v337
        %v726 = vunpack.c.h.b16 %v337
        %v727 = vunpack.c.l.b16 %v338
        %v728 = vunpack.c.h.b16 %v338
        %v729 = vunpack.c.l.b16 %v339
        %v730 = vunpack.c.h.b16 %v339
        %v731 = vunpack.c.l.b16 %v340
        %v732 = vunpack.c.h.b16 %v340
        %v733 = vunpack.c.l.b16 %v341
        %v734 = vunpack.c.h.b16 %v341
        %v735 = vunpack.c.l.b16 %v342
        %v736 = vunpack.c.h.b16 %v342
        %v737 = vunpack.c.l.b16 %v343
        %v738 = vunpack.c.h.b16 %v343
        %v739 = vunpack.c.l.b16 %v344
        %v740 = vunpack.c.h.b16 %v344
        %v741 = vunpack.c.l.b16 %v345
        %v742 = vunpack.c.h.b16 %v345
        %v743 = vunpack.c.l.b16 %v346
        %v744 = vunpack.c.h.b16 %v346
        %v745 = vunpack.c.l.b16 %v347
        %v746 = vunpack.c.h.b16 %v347
        %v747 = vunpack.c.l.b16 %v348
        %v748 = vunpack.c.h.b16 %v348
        %v749 = vunpack.c.l.b16 %v349
        %v750 = vunpack.c.h.b16 %v349
        %v751 = vunpack.c.l.b16 %v350
        %v752 = vunpack.c.h.b16 %v350
        %v753 = vunpack.c.l.b16 %v351
        %v754 = vunpack.c.h.b16 %v351
        %v755 = vpack.c.b16 %v501, %v499
        %v756 = vpack.c.b16 %v502, %v500
        %v757 = vpack.c.b16 %v505, %v503
        %v758 = vpack.c.b16 %v506, %v504
        %v759 = vpack.c.b16 %v509, %v507
        %v760 = vpack.c.b16 %v510, %v508
        %v761 = vpack.c.b16 %v513, %v511
        %v762 = vpack.c.b16 %v514, %v512
        %v763 = vpack.c.b16 %v517, %v515
        %v764 = vpack.c.b16 %v518, %v516
        %v765 = vpack.c.b16 %v521, %v519
        %v766 = vpack.c.b16 %v522, %v520
        %v767 = vpack.c.b16 %v525, %v523
        %v768 = vpack.c.b16 %v526, %v524
        %v769 = vpack.c.b16 %v529, %v527
        %v770 = vpack.c.b16 %v530, %v528
        %v771 = vpack.c.b16 %v533, %v531
        %v772 = vpack.c.b16 %v534, %v532
        %v773 = vpack.c.b16 %v537, %v535
        %v774 = vpack.c.b16 %v538, %v536
        %v775 = vpack.c.b16 %v541, %v539
        %v776 = vpack.c.b16 %v542, %v540
        %v777 = vpack.c.b16 %v545, %v543
        %v778 = vpack.c.b16 %v546, %v544
        %v779 = vpack.c.b16 %v549, %v547
        %v780 = vpack.c.b16 %v550, %v548
        %v781 = vpack.c.b16 %v553, %v551
        %v782 = vpack.c.b16 %v554, %v552
        %v783 = vpack.c.b16 %v557, %v555
        %v784 = vpack.c.b16 %v558, %v556
        %v785 = vpack.c.b16 %v561, %v559
        %v786 = vpack.c.b16 %v562, %v560
        %v787 = vpack.c.b16 %v565, %v563
        %v788 = vpack.c.b16 %v566, %v564
        %v789 = vpack.c.b16 %v569, %v567
        %v790 = vpack.c.b16 %v570, %v568
        %v791 = vpack.c.b16 %v573, %v571
        %v792 = vpack.c.b16 %v574, %v572
        %v793 = vpack.c.b16 %v577, %v575
        %v794 = vpack.c.b16 %v578, %v576
        %v795 = vpack.c.b16 %v581, %v579
        %v796 = vpack.c.b16 %v582, %v580
        %v797 = vpack.c.b16 %v585, %v583
        %v798 = vpack.c.b16 %v586, %v584
        %v799 = vpack.c.b16 %v589, %v587
        %v800 = vpack.c.b16 %v590, %v588
        %v801 = vpack.c.b16 %v593, %v591
        %v802 = vpack.c.b16 %v594, %v592
        %v803 = vpack.c.b16 %v597, %v595
        %v804 = vpack.c.b16 %v598, %v596
        %v805 = vpack.c.b16 %v601, %v599
        %v806 = vpack.c.b16 %v602, %v600
        %v807 = vpack.c.b16 %v605, %v603
        %v808 = vpack.c.b16 %v606, %v604
        %v809 = vpack.c.b16 %v609, %v607
        %v810 = vpack.c.b16 %v610, %v608
        %v811 = vpack.c.b16 %v613, %v611
        %v812 = vpack.c.b16 %v614, %v612
        %v813 = vpack.c.b16 %v617, %v615
        %v814 = vpack.c.b16 %v618, %v616
        %v815 = vpack.c.b16 %v621, %v619
        %v816 = vpack.c.b16 %v622, %v620
        %v817 = vpack.c.b16 %v625, %v623
        %v818 = vpack.c.b16 %v626, %v624
        %v819 = vpack.c.b16 %v629, %v627
        %v820 = vpack.c.b16 %v630, %v628
        %v821 = vpack.c.b16 %v633, %v631
        %v822 = vpack.c.b16 %v634, %v632
        %v823 = vpack.c.b16 %v637, %v635
        %v824 = vpack.c.b16 %v638, %v636
        %v825 = vpack.c.b16 %v641, %v639
        %v826 = vpack.c.b16 %v642, %v640
        %v827 = vpack.c.b16 %v645, %v643
        %v828 = vpack.c.b16 %v646, %v644
        %v829 = vpack.c.b16 %v649, %v647
        %v830 = vpack.c.b16 %v650, %v648
        %v831 = vpack.c.b16 %v653, %v651
        %v832 = vpack.c.b16 %v654, %v652
        %v833 = vpack.c.b16 %v657, %v655
        %v834 = vpack.c.b16 %v658, %v656
        %v835 = vpack.c.b16 %v661, %v659
        %v836 = vpack.c.b16 %v662, %v660
        %v837 = vpack.c.b16 %v665, %v663
        %v838 = vpack.c.b16 %v666, %v664
        %v839 = vpack.c.b16 %v669, %v667
        %v840 = vpack.c.b16 %v670, %v668
        %v841 = vpack.c.b16 %v673, %v671
        %v842 = vpack.c.b16 %v674, %v672
        %v843 = vpack.c.b16 %v677, %v675
        %v844 = vpack.c.b16 %v678, %v676
        %v845 = vpack.c.b16 %v681, %v679
        %v846 = vpack.c.b16 %v682, %v680
        %v847 = vpack.c.b16 %v685, %v683
        %v848 = vpack.c.b16 %v686, %v684
        %v849 = vpack.c.b16 %v689, %v687
        %v850 = vpack.c.b16 %v690, %v688
        %v851 = vpack.c.b16 %v693, %v691
        %v852 = vpack.c.b16 %v694, %v692
        %v853 = vpack.c.b16 %v697, %v695
        %v854 = vpack.c.b16 %v698, %v696
        %v855 = vpack.c.b16 %v701, %v699
        %v856 = vpack.c.b16 %v702, %v700
        %v857 = vpack.c.b16 %v705, %v703
        %v858 = vpack.c.b16 %v706, %v704
        %v859 = vpack.c.b16 %v709, %v707
        %v860 = vpack.c.b16 %v710, %v708
        %v861 = vpack.c.b16 %v713, %v711
        %v862 = vpack.c.b16 %v714, %v712
        %v863 = vpack.c.b16 %v717, %v715
        %v864 = vpack.c.b16 %v718, %v716
        %v865 = vpack.c.b16 %v721, %v719
        %v866 = vpack.c.b16 %v722, %v720
        %v867 = vpack.c.b16 %v725, %v723
        %v868 = vpack.c.b16 %v726, %v724
        %v869 = vpack.c.b16 %v729, %v727
        %v870 = vpack.c.b16 %v730, %v728
        %v871 = vpack.c.b16 %v733, %v731
        %v872 = vpack.c.b16 %v734, %v732
        %v873 = vpack.c.b16 %v737, %v735
        %v874 = vpack.c.b16 %v738, %v736
        %v875 = vpack.c.b16 %v741, %v739
        %v876 = vpack.c.b16 %v742, %v740
        %v877 = vpack.c.b16 %v745, %v743
        %v878 = vpack.c.b16 %v746, %v744
        %v879 = vpack.c.b16 %v749, %v747
        %v880 = vpack.c.b16 %v750, %v748
        %v881 = vpack.c.b16 %v753, %v751
        %v882 = vpack.c.b16 %v754, %v752
        %v966 = vunpack.c.l.b16 %v352
        %v967 = vunpack.c.l.b16 %v353
        %v968 = vunpack.c.l.b16 %v354
        %v969 = vunpack.c.l.b16 %v355
        %v970 = vunpack.c.l.b16 %v356
        %v971 = vunpack.c.l.b16 %v357
        %v972 = vunpack.c.l.b16 %v358
        %v973 = vunpack.c.l.b16 %v359
        %v974 = vunpack.c.l.b16 %v360
        %v975 = vunpack.c.l.b16 %v361
        %v976 = vunpack.c.l.b16 %v362
        %v977 = vunpack.c.l.b16 %v363
        %v978 = vunpack.c.l.b16 %v364
        %v979 = vunpack.c.l.b16 %v365
        %v980 = vunpack.c.l.b16 %v366
        %v981 = vunpack.c.l.b16 %v367
        %v982 = vunpack.c.l.b16 %v368
        %v983 = vunpack.c.l.b16 %v369
        %v984 = vunpack.c.l.b16 %v370
        %v985 = vpack.c.b16 %v967, %v966
        %v986 = vpack.c.b16 %v969, %v968
        %v987 = vpack.c.b16 %v971, %v970
        %v988 = vpack.c.b16 %v973, %v972
        %v989 = vpack.c.b16 %v975, %v974
        %v990 = vpack.c.b16 %v977, %v976
        %v991 = vpack.c.b16 %v979, %v978
        %v992 = vpack.c.b16 %v981, %v980
        %v993 = vpack.c.b16 %v983, %v982
        %v994 = vpack.c.b16 %v984, %v984
        %vm1004 = vcmask 154624
        %v1006 = vsel %vm1004, %v756, 0
        %v1009 = vsel %vm1004, %v758, 0
        %v1012 = vsel %vm1004, %v760, 0
        %v1015 = vsel %vm1004, %v762, 0
        %v1018 = vsel %vm1004, %v764, 0
        %v1021 = vsel %vm1004, %v766, 0
        %v1024 = vsel %vm1004, %v768, 0
        %v1027 = vsel %vm1004, %v770, 0
        %v1030 = vsel %vm1004, %v772, 0
        %v1033 = vsel %vm1004, %v774, 0
        %v1036 = vsel %vm1004, %v776, 0
        %v1039 = vsel %vm1004, %v778, 0
        %v1042 = vsel %vm1004, %v780, 0
        %v1045 = vsel %vm1004, %v782, 0
        %v1048 = vsel %vm1004, %v784, 0
        %v1051 = vsel %vm1004, %v786, 0
        %v1054 = vsel %vm1004, %v788, 0
        %v1057 = vsel %vm1004, %v790, 0
        %v1060 = vsel %vm1004, %v792, 0
        %v1063 = vsel %vm1004, %v794, 0
        %v1066 = vsel %vm1004, %v796, 0
        %v1069 = vsel %vm1004, %v798, 0
        %v1072 = vsel %vm1004, %v800, 0
        %v1075 = vsel %vm1004, %v802, 0
        %v1078 = vsel %vm1004, %v804, 0
        %v1081 = vsel %vm1004, %v806, 0
        %v1084 = vsel %vm1004, %v808, 0
        %v1087 = vsel %vm1004, %v810, 0
        %v1090 = vsel %vm1004, %v812, 0
        %v1093 = vsel %vm1004, %v814, 0
        %v1096 = vsel %vm1004, %v816, 0
        %v1099 = vsel %vm1004, %v818, 0
        %v1102 = vsel %vm1004, %v820, 0
        %v1105 = vsel %vm1004, %v822, 0
        %v1108 = vsel %vm1004, %v824, 0
        %v1111 = vsel %vm1004, %v826, 0
        %v1114 = vsel %vm1004, %v828, 0
        %v1117 = vsel %vm1004, %v830, 0
        %v1120 = vsel %vm1004, %v832, 0
        %v1123 = vsel %vm1004, %v834, 0
        %v1126 = vsel %vm1004, %v836, 0
        %v1129 = vsel %vm1004, %v838, 0
        %v1132 = vsel %vm1004, %v840, 0
        %v1135 = vsel %vm1004, %v842, 0
        %v1138 = vsel %vm1004, %v844, 0
        %v1141 = vsel %vm1004, %v846, 0
        %v1144 = vsel %vm1004, %v848, 0
        %v1147 = vsel %vm1004, %v850, 0
        %v1150 = vsel %vm1004, %v852, 0
        %v1153 = vsel %vm1004, %v854, 0
        %v1156 = vsel %vm1004, %v856, 0
        %v1159 = vsel %vm1004, %v858, 0
        %v1162 = vsel %vm1004, %v860, 0
        %v1165 = vsel %vm1004, %v862, 0
        %v1168 = vsel %vm1004, %v864, 0
        %v1171 = vsel %vm1004, %v866, 0
        %v1174 = vsel %vm1004, %v868, 0
        %v1177 = vsel %vm1004, %v870, 0
        %v1180 = vsel %vm1004, %v872, 0
        %v1183 = vsel %vm1004, %v874, 0
        %v1186 = vsel %vm1004, %v876, 0
        %v1189 = vsel %vm1004, %v878, 0
        %v1192 = vsel %vm1004, %v880, 0
        %v1195 = vsel %vm1004, %v882, 0
        %vm1197 = vcmask 1040384
        %vm1198 = vcmask 1041408
        %v1199 = vsel %vm1197, 4294967295, 65535
        %v1200 = vsel %vm1198, %v1199, 0
        %v1202 = vand.u32 %v994, %v1200
        %1204 = vmatpush.bf16.msra.mxu0 %v992
        %1205 = vmatpush.bf16.msra.mxu0 %v991
        %1206 = vmatpush.bf16.msra.mxu0 %v990
        %1207 = vmatpush.bf16.msra.mxu0 %v989
        %1208 = vmatpush.bf16.msra.mxu0 %v988
        %1209 = vmatpush.bf16.msra.mxu0 %v987
        %1210 = vmatpush.bf16.msra.mxu0 %v986
        %1211 = vmatpush.bf16.msra.mxu0 %v985
        %1212 = vmatmul.bf16.gmra.mxu0 %v755
        %v1213 = vpop.f32.mrf.mxu0
        %v1214 = vadd.f32 0.0, %v1213
        %v1215 = vpop.f32.mrf.mxu0
        %v1216 = vadd.f32 0.0, %v1215
        %1217 = vmatmul.bf16.gmra.mxu0 %v757
        %v1218 = vpop.f32.mrf.mxu0
        %v1219 = vadd.f32 0.0, %v1218
        %v1220 = vpop.f32.mrf.mxu0
        %v1221 = vadd.f32 0.0, %v1220
        %1222 = vmatmul.bf16.gmra.mxu0 %v759
        %v1223 = vpop.f32.mrf.mxu0
        %v1224 = vadd.f32 0.0, %v1223
        %v1225 = vpop.f32.mrf.mxu0
        %v1226 = vadd.f32 0.0, %v1225
        %1227 = vmatmul.bf16.gmra.mxu0 %v761
        %v1228 = vpop.f32.mrf.mxu0
        %v1229 = vadd.f32 0.0, %v1228
        %v1230 = vpop.f32.mrf.mxu0
        %v1231 = vadd.f32 0.0, %v1230
        %1232 = vmatmul.bf16.gmra.mxu0 %v763
        %v1233 = vpop.f32.mrf.mxu0
        %v1234 = vadd.f32 0.0, %v1233
        %v1235 = vpop.f32.mrf.mxu0
        %v1236 = vadd.f32 0.0, %v1235
        %1237 = vmatmul.bf16.gmra.mxu0 %v765
        %v1238 = vpop.f32.mrf.mxu0
        %v1239 = vadd.f32 0.0, %v1238
        %v1240 = vpop.f32.mrf.mxu0
        %v1241 = vadd.f32 0.0, %v1240
        %1242 = vmatmul.bf16.gmra.mxu0 %v767
        %v1243 = vpop.f32.mrf.mxu0
        %v1244 = vadd.f32 0.0, %v1243
        %v1245 = vpop.f32.mrf.mxu0
        %v1246 = vadd.f32 0.0, %v1245
        %1247 = vmatmul.bf16.gmra.mxu0 %v769
        %v1248 = vpop.f32.mrf.mxu0
        %v1249 = vadd.f32 0.0, %v1248
        %v1250 = vpop.f32.mrf.mxu0
        %v1251 = vadd.f32 0.0, %v1250
        %1252 = vmatmul.bf16.gmra.mxu0 %v771
        %v1253 = vpop.f32.mrf.mxu0
        %v1254 = vadd.f32 0.0, %v1253
        %v1255 = vpop.f32.mrf.mxu0
        %v1256 = vadd.f32 0.0, %v1255
        %1257 = vmatmul.bf16.gmra.mxu0 %v773
        %v1258 = vpop.f32.mrf.mxu0
        %v1259 = vadd.f32 0.0, %v1258
        %v1260 = vpop.f32.mrf.mxu0
        %v1261 = vadd.f32 0.0, %v1260
        %1262 = vmatmul.bf16.gmra.mxu0 %v775
        %v1263 = vpop.f32.mrf.mxu0
        %v1264 = vadd.f32 0.0, %v1263
        %v1265 = vpop.f32.mrf.mxu0
        %v1266 = vadd.f32 0.0, %v1265
        %1267 = vmatmul.bf16.gmra.mxu0 %v777
        %v1268 = vpop.f32.mrf.mxu0
        %v1269 = vadd.f32 0.0, %v1268
        %v1270 = vpop.f32.mrf.mxu0
        %v1271 = vadd.f32 0.0, %v1270
        %1272 = vmatmul.bf16.gmra.mxu0 %v779
        %v1273 = vpop.f32.mrf.mxu0
        %v1274 = vadd.f32 0.0, %v1273
        %v1275 = vpop.f32.mrf.mxu0
        %v1276 = vadd.f32 0.0, %v1275
        %1277 = vmatmul.bf16.gmra.mxu0 %v781
        %v1278 = vpop.f32.mrf.mxu0
        %v1279 = vadd.f32 0.0, %v1278
        %v1280 = vpop.f32.mrf.mxu0
        %v1281 = vadd.f32 0.0, %v1280
        %1282 = vmatmul.bf16.gmra.mxu0 %v783
        %v1283 = vpop.f32.mrf.mxu0
        %v1284 = vadd.f32 0.0, %v1283
        %v1285 = vpop.f32.mrf.mxu0
        %v1286 = vadd.f32 0.0, %v1285
        %1287 = vmatmul.bf16.gmra.mxu0 %v785
        %v1288 = vpop.f32.mrf.mxu0
        %v1289 = vadd.f32 0.0, %v1288
        %v1290 = vpop.f32.mrf.mxu0
        %v1291 = vadd.f32 0.0, %v1290
        %1292 = vmatmul.bf16.gmra.mxu0 %v787
        %v1293 = vpop.f32.mrf.mxu0
        %v1294 = vadd.f32 0.0, %v1293
        %v1295 = vpop.f32.mrf.mxu0
        %v1296 = vadd.f32 0.0, %v1295
        %1297 = vmatmul.bf16.gmra.mxu0 %v789
        %v1298 = vpop.f32.mrf.mxu0
        %v1299 = vadd.f32 0.0, %v1298
        %v1300 = vpop.f32.mrf.mxu0
        %v1301 = vadd.f32 0.0, %v1300
        %1302 = vmatmul.bf16.gmra.mxu0 %v791
        %v1303 = vpop.f32.mrf.mxu0
        %v1304 = vadd.f32 0.0, %v1303
        %v1305 = vpop.f32.mrf.mxu0
        %v1306 = vadd.f32 0.0, %v1305
        %1307 = vmatmul.bf16.gmra.mxu0 %v793
        %v1308 = vpop.f32.mrf.mxu0
        %v1309 = vadd.f32 0.0, %v1308
        %v1310 = vpop.f32.mrf.mxu0
        %v1311 = vadd.f32 0.0, %v1310
        %1312 = vmatmul.bf16.gmra.mxu0 %v795
        %v1313 = vpop.f32.mrf.mxu0
        %v1314 = vadd.f32 0.0, %v1313
        %v1315 = vpop.f32.mrf.mxu0
        %v1316 = vadd.f32 0.0, %v1315
        %1317 = vmatmul.bf16.gmra.mxu0 %v797
        %v1318 = vpop.f32.mrf.mxu0
        %v1319 = vadd.f32 0.0, %v1318
        %v1320 = vpop.f32.mrf.mxu0
        %v1321 = vadd.f32 0.0, %v1320
        %1322 = vmatmul.bf16.gmra.mxu0 %v799
        %v1323 = vpop.f32.mrf.mxu0
        %v1324 = vadd.f32 0.0, %v1323
        %v1325 = vpop.f32.mrf.mxu0
        %v1326 = vadd.f32 0.0, %v1325
        %1327 = vmatmul.bf16.gmra.mxu0 %v801
        %v1328 = vpop.f32.mrf.mxu0
        %v1329 = vadd.f32 0.0, %v1328
        %v1330 = vpop.f32.mrf.mxu0
        %v1331 = vadd.f32 0.0, %v1330
        %1332 = vmatmul.bf16.gmra.mxu0 %v803
        %v1333 = vpop.f32.mrf.mxu0
        %v1334 = vadd.f32 0.0, %v1333
        %v1335 = vpop.f32.mrf.mxu0
        %v1336 = vadd.f32 0.0, %v1335
        %1337 = vmatmul.bf16.gmra.mxu0 %v805
        %v1338 = vpop.f32.mrf.mxu0
        %v1339 = vadd.f32 0.0, %v1338
        %v1340 = vpop.f32.mrf.mxu0
        %v1341 = vadd.f32 0.0, %v1340
        %1342 = vmatmul.bf16.gmra.mxu0 %v807
        %v1343 = vpop.f32.mrf.mxu0
        %v1344 = vadd.f32 0.0, %v1343
        %v1345 = vpop.f32.mrf.mxu0
        %v1346 = vadd.f32 0.0, %v1345
        %1347 = vmatmul.bf16.gmra.mxu0 %v809
        %v1348 = vpop.f32.mrf.mxu0
        %v1349 = vadd.f32 0.0, %v1348
        %v1350 = vpop.f32.mrf.mxu0
        %v1351 = vadd.f32 0.0, %v1350
        %1352 = vmatmul.bf16.gmra.mxu0 %v811
        %v1353 = vpop.f32.mrf.mxu0
        %v1354 = vadd.f32 0.0, %v1353
        %v1355 = vpop.f32.mrf.mxu0
        %v1356 = vadd.f32 0.0, %v1355
        %1357 = vmatmul.bf16.gmra.mxu0 %v813
        %v1358 = vpop.f32.mrf.mxu0
        %v1359 = vadd.f32 0.0, %v1358
        %v1360 = vpop.f32.mrf.mxu0
        %v1361 = vadd.f32 0.0, %v1360
        %1362 = vmatmul.bf16.gmra.mxu0 %v815
        %v1363 = vpop.f32.mrf.mxu0
        %v1364 = vadd.f32 0.0, %v1363
        %v1365 = vpop.f32.mrf.mxu0
        %v1366 = vadd.f32 0.0, %v1365
        %1367 = vmatmul.bf16.gmra.mxu0 %v817
        %v1368 = vpop.f32.mrf.mxu0
        %v1369 = vadd.f32 0.0, %v1368
        %v1370 = vpop.f32.mrf.mxu0
        %v1371 = vadd.f32 0.0, %v1370
        %1372 = vmatmul.bf16.gmra.mxu0 %v819
        %v1373 = vpop.f32.mrf.mxu0
        %v1374 = vadd.f32 0.0, %v1373
        %v1375 = vpop.f32.mrf.mxu0
        %v1376 = vadd.f32 0.0, %v1375
        %1377 = vmatmul.bf16.gmra.mxu0 %v821
        %v1378 = vpop.f32.mrf.mxu0
        %v1379 = vadd.f32 0.0, %v1378
        %v1380 = vpop.f32.mrf.mxu0
        %v1381 = vadd.f32 0.0, %v1380
        %1382 = vmatmul.bf16.gmra.mxu0 %v823
        %v1383 = vpop.f32.mrf.mxu0
        %v1384 = vadd.f32 0.0, %v1383
        %v1385 = vpop.f32.mrf.mxu0
        %v1386 = vadd.f32 0.0, %v1385
        %1387 = vmatmul.bf16.gmra.mxu0 %v825
        %v1388 = vpop.f32.mrf.mxu0
        %v1389 = vadd.f32 0.0, %v1388
        %v1390 = vpop.f32.mrf.mxu0
        %v1391 = vadd.f32 0.0, %v1390
        %1392 = vmatmul.bf16.gmra.mxu0 %v827
        %v1393 = vpop.f32.mrf.mxu0
        %v1394 = vadd.f32 0.0, %v1393
        %v1395 = vpop.f32.mrf.mxu0
        %v1396 = vadd.f32 0.0, %v1395
        %1397 = vmatmul.bf16.gmra.mxu0 %v829
        %v1398 = vpop.f32.mrf.mxu0
        %v1399 = vadd.f32 0.0, %v1398
        %v1400 = vpop.f32.mrf.mxu0
        %v1401 = vadd.f32 0.0, %v1400
        %1402 = vmatmul.bf16.gmra.mxu0 %v831
        %v1403 = vpop.f32.mrf.mxu0
        %v1404 = vadd.f32 0.0, %v1403
        %v1405 = vpop.f32.mrf.mxu0
        %v1406 = vadd.f32 0.0, %v1405
        %1407 = vmatmul.bf16.gmra.mxu0 %v833
        %v1408 = vpop.f32.mrf.mxu0
        %v1409 = vadd.f32 0.0, %v1408
        %v1410 = vpop.f32.mrf.mxu0
        %v1411 = vadd.f32 0.0, %v1410
        %1412 = vmatmul.bf16.gmra.mxu0 %v835
        %v1413 = vpop.f32.mrf.mxu0
        %v1414 = vadd.f32 0.0, %v1413
        %v1415 = vpop.f32.mrf.mxu0
        %v1416 = vadd.f32 0.0, %v1415
        %1417 = vmatmul.bf16.gmra.mxu0 %v837
        %v1418 = vpop.f32.mrf.mxu0
        %v1419 = vadd.f32 0.0, %v1418
        %v1420 = vpop.f32.mrf.mxu0
        %v1421 = vadd.f32 0.0, %v1420
        %1422 = vmatmul.bf16.gmra.mxu0 %v839
        %v1423 = vpop.f32.mrf.mxu0
        %v1424 = vadd.f32 0.0, %v1423
        %v1425 = vpop.f32.mrf.mxu0
        %v1426 = vadd.f32 0.0, %v1425
        %1427 = vmatmul.bf16.gmra.mxu0 %v841
        %v1428 = vpop.f32.mrf.mxu0
        %v1429 = vadd.f32 0.0, %v1428
        %v1430 = vpop.f32.mrf.mxu0
        %v1431 = vadd.f32 0.0, %v1430
        %1432 = vmatmul.bf16.gmra.mxu0 %v843
        %v1433 = vpop.f32.mrf.mxu0
        %v1434 = vadd.f32 0.0, %v1433
        %v1435 = vpop.f32.mrf.mxu0
        %v1436 = vadd.f32 0.0, %v1435
        %1437 = vmatmul.bf16.gmra.mxu0 %v845
        %v1438 = vpop.f32.mrf.mxu0
        %v1439 = vadd.f32 0.0, %v1438
        %v1440 = vpop.f32.mrf.mxu0
        %v1441 = vadd.f32 0.0, %v1440
        %1442 = vmatmul.bf16.gmra.mxu0 %v847
        %v1443 = vpop.f32.mrf.mxu0
        %v1444 = vadd.f32 0.0, %v1443
        %v1445 = vpop.f32.mrf.mxu0
        %v1446 = vadd.f32 0.0, %v1445
        %1447 = vmatmul.bf16.gmra.mxu0 %v849
        %v1448 = vpop.f32.mrf.mxu0
        %v1449 = vadd.f32 0.0, %v1448
        %v1450 = vpop.f32.mrf.mxu0
        %v1451 = vadd.f32 0.0, %v1450
        %1452 = vmatmul.bf16.gmra.mxu0 %v851
        %v1453 = vpop.f32.mrf.mxu0
        %v1454 = vadd.f32 0.0, %v1453
        %v1455 = vpop.f32.mrf.mxu0
        %v1456 = vadd.f32 0.0, %v1455
        %1457 = vmatmul.bf16.gmra.mxu0 %v853
        %v1458 = vpop.f32.mrf.mxu0
        %v1459 = vadd.f32 0.0, %v1458
        %v1460 = vpop.f32.mrf.mxu0
        %v1461 = vadd.f32 0.0, %v1460
        %1462 = vmatmul.bf16.gmra.mxu0 %v855
        %v1463 = vpop.f32.mrf.mxu0
        %v1464 = vadd.f32 0.0, %v1463
        %v1465 = vpop.f32.mrf.mxu0
        %v1466 = vadd.f32 0.0, %v1465
        %1467 = vmatmul.bf16.gmra.mxu0 %v857
        %v1468 = vpop.f32.mrf.mxu0
        %v1469 = vadd.f32 0.0, %v1468
        %v1470 = vpop.f32.mrf.mxu0
        %v1471 = vadd.f32 0.0, %v1470
        %1472 = vmatmul.bf16.gmra.mxu0 %v859
        %v1473 = vpop.f32.mrf.mxu0
        %v1474 = vadd.f32 0.0, %v1473
        %v1475 = vpop.f32.mrf.mxu0
        %v1476 = vadd.f32 0.0, %v1475
        %1477 = vmatmul.bf16.gmra.mxu0 %v861
        %v1478 = vpop.f32.mrf.mxu0
        %v1479 = vadd.f32 0.0, %v1478
        %v1480 = vpop.f32.mrf.mxu0
        %v1481 = vadd.f32 0.0, %v1480
        %1482 = vmatmul.bf16.gmra.mxu0 %v863
        %v1483 = vpop.f32.mrf.mxu0
        %v1484 = vadd.f32 0.0, %v1483
        %v1485 = vpop.f32.mrf.mxu0
        %v1486 = vadd.f32 0.0, %v1485
        %1487 = vmatmul.bf16.gmra.mxu0 %v865
        %v1488 = vpop.f32.mrf.mxu0
        %v1489 = vadd.f32 0.0, %v1488
        %v1490 = vpop.f32.mrf.mxu0
        %v1491 = vadd.f32 0.0, %v1490
        %1492 = vmatmul.bf16.gmra.mxu0 %v867
        %v1493 = vpop.f32.mrf.mxu0
        %v1494 = vadd.f32 0.0, %v1493
        %v1495 = vpop.f32.mrf.mxu0
        %v1496 = vadd.f32 0.0, %v1495
        %1497 = vmatmul.bf16.gmra.mxu0 %v869
        %v1498 = vpop.f32.mrf.mxu0
        %v1499 = vadd.f32 0.0, %v1498
        %v1500 = vpop.f32.mrf.mxu0
        %v1501 = vadd.f32 0.0, %v1500
        %1502 = vmatmul.bf16.gmra.mxu0 %v871
        %v1503 = vpop.f32.mrf.mxu0
        %v1504 = vadd.f32 0.0, %v1503
        %v1505 = vpop.f32.mrf.mxu0
        %v1506 = vadd.f32 0.0, %v1505
        %1507 = vmatmul.bf16.gmra.mxu0 %v873
        %v1508 = vpop.f32.mrf.mxu0
        %v1509 = vadd.f32 0.0, %v1508
        %v1510 = vpop.f32.mrf.mxu0
        %v1511 = vadd.f32 0.0, %v1510
        %1512 = vmatmul.bf16.gmra.mxu0 %v875
        %v1513 = vpop.f32.mrf.mxu0
        %v1514 = vadd.f32 0.0, %v1513
        %v1515 = vpop.f32.mrf.mxu0
        %v1516 = vadd.f32 0.0, %v1515
        %1517 = vmatmul.bf16.gmra.mxu0 %v877
        %v1518 = vpop.f32.mrf.mxu0
        %v1519 = vadd.f32 0.0, %v1518
        %v1520 = vpop.f32.mrf.mxu0
        %v1521 = vadd.f32 0.0, %v1520
        %1522 = vmatmul.bf16.gmra.mxu0 %v879
        %v1523 = vpop.f32.mrf.mxu0
        %v1524 = vadd.f32 0.0, %v1523
        %v1525 = vpop.f32.mrf.mxu0
        %v1526 = vadd.f32 0.0, %v1525
        %1527 = vmatmul.bf16.gmra.mxu0 %v881
        %v1528 = vpop.f32.mrf.mxu0
        %v1529 = vadd.f32 0.0, %v1528
        %v1530 = vpop.f32.mrf.mxu0
        %v1531 = vadd.f32 0.0, %v1530
        %1532 = vdwg.mxu0
        %1533 = vmatpush.bf16.msra.mxu0 0
        %1534 = vmatpush.bf16.msra.mxu0 0
        %1535 = vmatpush.bf16.msra.mxu0 0
        %1536 = vmatpush.bf16.msra.mxu0 0
        %1537 = vmatpush.bf16.msra.mxu0 0
        %1538 = vmatpush.bf16.msra.mxu0 0
        %1539 = vmatpush.bf16.msra.mxu0 %v1202
        %1540 = vmatpush.bf16.msra.mxu0 %v993
        %1541 = vmatmul.bf16.gmra.mxu0 %v1006
        %v1542 = vpop.f32.mrf.mxu0
        %v1543 = vadd.f32 %v1214, %v1542
        %v1544 = vpop.f32.mrf.mxu0
        %v1545 = vadd.f32 %v1216, %v1544
        %1546 = vmatmul.bf16.gmra.mxu0 %v1009
        %v1547 = vpop.f32.mrf.mxu0
        %v1548 = vadd.f32 %v1219, %v1547
        %v1549 = vpop.f32.mrf.mxu0
        %v1550 = vadd.f32 %v1221, %v1549
        %1551 = vmatmul.bf16.gmra.mxu0 %v1012
        %v1552 = vpop.f32.mrf.mxu0
        %v1553 = vadd.f32 %v1224, %v1552
        %v1554 = vpop.f32.mrf.mxu0
        %v1555 = vadd.f32 %v1226, %v1554
        %1556 = vmatmul.bf16.gmra.mxu0 %v1015
        %v1557 = vpop.f32.mrf.mxu0
        %v1558 = vadd.f32 %v1229, %v1557
        %v1559 = vpop.f32.mrf.mxu0
        %v1560 = vadd.f32 %v1231, %v1559
        %1561 = vmatmul.bf16.gmra.mxu0 %v1018
        %v1562 = vpop.f32.mrf.mxu0
        %v1563 = vadd.f32 %v1234, %v1562
        %v1564 = vpop.f32.mrf.mxu0
        %v1565 = vadd.f32 %v1236, %v1564
        %1566 = vmatmul.bf16.gmra.mxu0 %v1021
        %v1567 = vpop.f32.mrf.mxu0
        %v1568 = vadd.f32 %v1239, %v1567
        %v1569 = vpop.f32.mrf.mxu0
        %v1570 = vadd.f32 %v1241, %v1569
        %1571 = vmatmul.bf16.gmra.mxu0 %v1024
        %v1572 = vpop.f32.mrf.mxu0
        %v1573 = vadd.f32 %v1244, %v1572
        %v1574 = vpop.f32.mrf.mxu0
        %v1575 = vadd.f32 %v1246, %v1574
        %1576 = vmatmul.bf16.gmra.mxu0 %v1027
        %v1577 = vpop.f32.mrf.mxu0
        %v1578 = vadd.f32 %v1249, %v1577
        %v1579 = vpop.f32.mrf.mxu0
        %v1580 = vadd.f32 %v1251, %v1579
        %1581 = vmatmul.bf16.gmra.mxu0 %v1030
        %v1582 = vpop.f32.mrf.mxu0
        %v1583 = vadd.f32 %v1254, %v1582
        %v1584 = vpop.f32.mrf.mxu0
        %v1585 = vadd.f32 %v1256, %v1584
        %1586 = vmatmul.bf16.gmra.mxu0 %v1033
        %v1587 = vpop.f32.mrf.mxu0
        %v1588 = vadd.f32 %v1259, %v1587
        %v1589 = vpop.f32.mrf.mxu0
        %v1590 = vadd.f32 %v1261, %v1589
        %1591 = vmatmul.bf16.gmra.mxu0 %v1036
        %v1592 = vpop.f32.mrf.mxu0
        %v1593 = vadd.f32 %v1264, %v1592
        %v1594 = vpop.f32.mrf.mxu0
        %v1595 = vadd.f32 %v1266, %v1594
        %1596 = vmatmul.bf16.gmra.mxu0 %v1039
        %v1597 = vpop.f32.mrf.mxu0
        %v1598 = vadd.f32 %v1269, %v1597
        %v1599 = vpop.f32.mrf.mxu0
        %v1600 = vadd.f32 %v1271, %v1599
        %1601 = vmatmul.bf16.gmra.mxu0 %v1042
        %v1602 = vpop.f32.mrf.mxu0
        %v1603 = vadd.f32 %v1274, %v1602
        %v1604 = vpop.f32.mrf.mxu0
        %v1605 = vadd.f32 %v1276, %v1604
        %1606 = vmatmul.bf16.gmra.mxu0 %v1045
        %v1607 = vpop.f32.mrf.mxu0
        %v1608 = vadd.f32 %v1279, %v1607
        %v1609 = vpop.f32.mrf.mxu0
        %v1610 = vadd.f32 %v1281, %v1609
        %1611 = vmatmul.bf16.gmra.mxu0 %v1048
        %v1612 = vpop.f32.mrf.mxu0
        %v1613 = vadd.f32 %v1284, %v1612
        %v1614 = vpop.f32.mrf.mxu0
        %v1615 = vadd.f32 %v1286, %v1614
        %1616 = vmatmul.bf16.gmra.mxu0 %v1051
        %v1617 = vpop.f32.mrf.mxu0
        %v1618 = vadd.f32 %v1289, %v1617
        %v1619 = vpop.f32.mrf.mxu0
        %v1620 = vadd.f32 %v1291, %v1619
        %1621 = vmatmul.bf16.gmra.mxu0 %v1054
        %v1622 = vpop.f32.mrf.mxu0
        %v1623 = vadd.f32 %v1294, %v1622
        %v1624 = vpop.f32.mrf.mxu0
        %v1625 = vadd.f32 %v1296, %v1624
        %1626 = vmatmul.bf16.gmra.mxu0 %v1057
        %v1627 = vpop.f32.mrf.mxu0
        %v1628 = vadd.f32 %v1299, %v1627
        %v1629 = vpop.f32.mrf.mxu0
        %v1630 = vadd.f32 %v1301, %v1629
        %1631 = vmatmul.bf16.gmra.mxu0 %v1060
        %v1632 = vpop.f32.mrf.mxu0
        %v1633 = vadd.f32 %v1304, %v1632
        %v1634 = vpop.f32.mrf.mxu0
        %v1635 = vadd.f32 %v1306, %v1634
        %1636 = vmatmul.bf16.gmra.mxu0 %v1063
        %v1637 = vpop.f32.mrf.mxu0
        %v1638 = vadd.f32 %v1309, %v1637
        %v1639 = vpop.f32.mrf.mxu0
        %v1640 = vadd.f32 %v1311, %v1639
        %1641 = vmatmul.bf16.gmra.mxu0 %v1066
        %v1642 = vpop.f32.mrf.mxu0
        %v1643 = vadd.f32 %v1314, %v1642
        %v1644 = vpop.f32.mrf.mxu0
        %v1645 = vadd.f32 %v1316, %v1644
        %1646 = vmatmul.bf16.gmra.mxu0 %v1069
        %v1647 = vpop.f32.mrf.mxu0
        %v1648 = vadd.f32 %v1319, %v1647
        %v1649 = vpop.f32.mrf.mxu0
        %v1650 = vadd.f32 %v1321, %v1649
        %1651 = vmatmul.bf16.gmra.mxu0 %v1072
        %v1652 = vpop.f32.mrf.mxu0
        %v1653 = vadd.f32 %v1324, %v1652
        %v1654 = vpop.f32.mrf.mxu0
        %v1655 = vadd.f32 %v1326, %v1654
        %1656 = vmatmul.bf16.gmra.mxu0 %v1075
        %v1657 = vpop.f32.mrf.mxu0
        %v1658 = vadd.f32 %v1329, %v1657
        %v1659 = vpop.f32.mrf.mxu0
        %v1660 = vadd.f32 %v1331, %v1659
        %1661 = vmatmul.bf16.gmra.mxu0 %v1078
        %v1662 = vpop.f32.mrf.mxu0
        %v1663 = vadd.f32 %v1334, %v1662
        %v1664 = vpop.f32.mrf.mxu0
        %v1665 = vadd.f32 %v1336, %v1664
        %1666 = vmatmul.bf16.gmra.mxu0 %v1081
        %v1667 = vpop.f32.mrf.mxu0
        %v1668 = vadd.f32 %v1339, %v1667
        %v1669 = vpop.f32.mrf.mxu0
        %v1670 = vadd.f32 %v1341, %v1669
        %1671 = vmatmul.bf16.gmra.mxu0 %v1084
        %v1672 = vpop.f32.mrf.mxu0
        %v1673 = vadd.f32 %v1344, %v1672
        %v1674 = vpop.f32.mrf.mxu0
        %v1675 = vadd.f32 %v1346, %v1674
        %1676 = vmatmul.bf16.gmra.mxu0 %v1087
        %v1677 = vpop.f32.mrf.mxu0
        %v1678 = vadd.f32 %v1349, %v1677
        %v1679 = vpop.f32.mrf.mxu0
        %v1680 = vadd.f32 %v1351, %v1679
        %1681 = vmatmul.bf16.gmra.mxu0 %v1090
        %v1682 = vpop.f32.mrf.mxu0
        %v1683 = vadd.f32 %v1354, %v1682
        %v1684 = vpop.f32.mrf.mxu0
        %v1685 = vadd.f32 %v1356, %v1684
        %1686 = vmatmul.bf16.gmra.mxu0 %v1093
        %v1687 = vpop.f32.mrf.mxu0
        %v1688 = vadd.f32 %v1359, %v1687
        %v1689 = vpop.f32.mrf.mxu0
        %v1690 = vadd.f32 %v1361, %v1689
        %1691 = vmatmul.bf16.gmra.mxu0 %v1096
        %v1692 = vpop.f32.mrf.mxu0
        %v1693 = vadd.f32 %v1364, %v1692
        %v1694 = vpop.f32.mrf.mxu0
        %v1695 = vadd.f32 %v1366, %v1694
        %1696 = vmatmul.bf16.gmra.mxu0 %v1099
        %v1697 = vpop.f32.mrf.mxu0
        %v1698 = vadd.f32 %v1369, %v1697
        %v1699 = vpop.f32.mrf.mxu0
        %v1700 = vadd.f32 %v1371, %v1699
        %1701 = vmatmul.bf16.gmra.mxu0 %v1102
        %v1702 = vpop.f32.mrf.mxu0
        %v1703 = vadd.f32 %v1374, %v1702
        %v1704 = vpop.f32.mrf.mxu0
        %v1705 = vadd.f32 %v1376, %v1704
        %1706 = vmatmul.bf16.gmra.mxu0 %v1105
        %v1707 = vpop.f32.mrf.mxu0
        %v1708 = vadd.f32 %v1379, %v1707
        %v1709 = vpop.f32.mrf.mxu0
        %v1710 = vadd.f32 %v1381, %v1709
        %1711 = vmatmul.bf16.gmra.mxu0 %v1108
        %v1712 = vpop.f32.mrf.mxu0
        %v1713 = vadd.f32 %v1384, %v1712
        %v1714 = vpop.f32.mrf.mxu0
        %v1715 = vadd.f32 %v1386, %v1714
        %1716 = vmatmul.bf16.gmra.mxu0 %v1111
        %v1717 = vpop.f32.mrf.mxu0
        %v1718 = vadd.f32 %v1389, %v1717
        %v1719 = vpop.f32.mrf.mxu0
        %v1720 = vadd.f32 %v1391, %v1719
        %1721 = vmatmul.bf16.gmra.mxu0 %v1114
        %v1722 = vpop.f32.mrf.mxu0
        %v1723 = vadd.f32 %v1394, %v1722
        %v1724 = vpop.f32.mrf.mxu0
        %v1725 = vadd.f32 %v1396, %v1724
        %1726 = vmatmul.bf16.gmra.mxu0 %v1117
        %v1727 = vpop.f32.mrf.mxu0
        %v1728 = vadd.f32 %v1399, %v1727
        %v1729 = vpop.f32.mrf.mxu0
        %v1730 = vadd.f32 %v1401, %v1729
        %1731 = vmatmul.bf16.gmra.mxu0 %v1120
        %v1732 = vpop.f32.mrf.mxu0
        %v1733 = vadd.f32 %v1404, %v1732
        %v1734 = vpop.f32.mrf.mxu0
        %v1735 = vadd.f32 %v1406, %v1734
        %1736 = vmatmul.bf16.gmra.mxu0 %v1123
        %v1737 = vpop.f32.mrf.mxu0
        %v1738 = vadd.f32 %v1409, %v1737
        %v1739 = vpop.f32.mrf.mxu0
        %v1740 = vadd.f32 %v1411, %v1739
        %1741 = vmatmul.bf16.gmra.mxu0 %v1126
        %v1742 = vpop.f32.mrf.mxu0
        %v1743 = vadd.f32 %v1414, %v1742
        %v1744 = vpop.f32.mrf.mxu0
        %v1745 = vadd.f32 %v1416, %v1744
        %1746 = vmatmul.bf16.gmra.mxu0 %v1129
        %v1747 = vpop.f32.mrf.mxu0
        %v1748 = vadd.f32 %v1419, %v1747
        %v1749 = vpop.f32.mrf.mxu0
        %v1750 = vadd.f32 %v1421, %v1749
        %1751 = vmatmul.bf16.gmra.mxu0 %v1132
        %v1752 = vpop.f32.mrf.mxu0
        %v1753 = vadd.f32 %v1424, %v1752
        %v1754 = vpop.f32.mrf.mxu0
        %v1755 = vadd.f32 %v1426, %v1754
        %1756 = vmatmul.bf16.gmra.mxu0 %v1135
        %v1757 = vpop.f32.mrf.mxu0
        %v1758 = vadd.f32 %v1429, %v1757
        %v1759 = vpop.f32.mrf.mxu0
        %v1760 = vadd.f32 %v1431, %v1759
        %1761 = vmatmul.bf16.gmra.mxu0 %v1138
        %v1762 = vpop.f32.mrf.mxu0
        %v1763 = vadd.f32 %v1434, %v1762
        %v1764 = vpop.f32.mrf.mxu0
        %v1765 = vadd.f32 %v1436, %v1764
        %1766 = vmatmul.bf16.gmra.mxu0 %v1141
        %v1767 = vpop.f32.mrf.mxu0
        %v1768 = vadd.f32 %v1439, %v1767
        %v1769 = vpop.f32.mrf.mxu0
        %v1770 = vadd.f32 %v1441, %v1769
        %1771 = vmatmul.bf16.gmra.mxu0 %v1144
        %v1772 = vpop.f32.mrf.mxu0
        %v1773 = vadd.f32 %v1444, %v1772
        %v1774 = vpop.f32.mrf.mxu0
        %v1775 = vadd.f32 %v1446, %v1774
        %1776 = vmatmul.bf16.gmra.mxu0 %v1147
        %v1777 = vpop.f32.mrf.mxu0
        %v1778 = vadd.f32 %v1449, %v1777
        %v1779 = vpop.f32.mrf.mxu0
        %v1780 = vadd.f32 %v1451, %v1779
        %1781 = vmatmul.bf16.gmra.mxu0 %v1150
        %v1782 = vpop.f32.mrf.mxu0
        %v1783 = vadd.f32 %v1454, %v1782
        %v1784 = vpop.f32.mrf.mxu0
        %v1785 = vadd.f32 %v1456, %v1784
        %1786 = vmatmul.bf16.gmra.mxu0 %v1153
        %v1787 = vpop.f32.mrf.mxu0
        %v1788 = vadd.f32 %v1459, %v1787
        %v1789 = vpop.f32.mrf.mxu0
        %v1790 = vadd.f32 %v1461, %v1789
        %1791 = vmatmul.bf16.gmra.mxu0 %v1156
        %v1792 = vpop.f32.mrf.mxu0
        %v1793 = vadd.f32 %v1464, %v1792
        %v1794 = vpop.f32.mrf.mxu0
        %v1795 = vadd.f32 %v1466, %v1794
        %1796 = vmatmul.bf16.gmra.mxu0 %v1159
        %v1797 = vpop.f32.mrf.mxu0
        %v1798 = vadd.f32 %v1469, %v1797
        %v1799 = vpop.f32.mrf.mxu0
        %v1800 = vadd.f32 %v1471, %v1799
        %1801 = vmatmul.bf16.gmra.mxu0 %v1162
        %v1802 = vpop.f32.mrf.mxu0
        %v1803 = vadd.f32 %v1474, %v1802
        %v1804 = vpop.f32.mrf.mxu0
        %v1805 = vadd.f32 %v1476, %v1804
        %1806 = vmatmul.bf16.gmra.mxu0 %v1165
        %v1807 = vpop.f32.mrf.mxu0
        %v1808 = vadd.f32 %v1479, %v1807
        %v1809 = vpop.f32.mrf.mxu0
        %v1810 = vadd.f32 %v1481, %v1809
        %1811 = vmatmul.bf16.gmra.mxu0 %v1168
        %v1812 = vpop.f32.mrf.mxu0
        %v1813 = vadd.f32 %v1484, %v1812
        %v1814 = vpop.f32.mrf.mxu0
        %v1815 = vadd.f32 %v1486, %v1814
        %1816 = vmatmul.bf16.gmra.mxu0 %v1171
        %v1817 = vpop.f32.mrf.mxu0
        %v1818 = vadd.f32 %v1489, %v1817
        %v1819 = vpop.f32.mrf.mxu0
        %v1820 = vadd.f32 %v1491, %v1819
        %1821 = vmatmul.bf16.gmra.mxu0 %v1174
        %v1822 = vpop.f32.mrf.mxu0
        %v1823 = vadd.f32 %v1494, %v1822
        %v1824 = vpop.f32.mrf.mxu0
        %v1825 = vadd.f32 %v1496, %v1824
        %1826 = vmatmul.bf16.gmra.mxu0 %v1177
        %v1827 = vpop.f32.mrf.mxu0
        %v1828 = vadd.f32 %v1499, %v1827
        %v1829 = vpop.f32.mrf.mxu0
        %v1830 = vadd.f32 %v1501, %v1829
        %1831 = vmatmul.bf16.gmra.mxu0 %v1180
        %v1832 = vpop.f32.mrf.mxu0
        %v1833 = vadd.f32 %v1504, %v1832
        %v1834 = vpop.f32.mrf.mxu0
        %v1835 = vadd.f32 %v1506, %v1834
        %1836 = vmatmul.bf16.gmra.mxu0 %v1183
        %v1837 = vpop.f32.mrf.mxu0
        %v1838 = vadd.f32 %v1509, %v1837
        %v1839 = vpop.f32.mrf.mxu0
        %v1840 = vadd.f32 %v1511, %v1839
        %1841 = vmatmul.bf16.gmra.mxu0 %v1186
        %v1842 = vpop.f32.mrf.mxu0
        %v1843 = vadd.f32 %v1514, %v1842
        %v1844 = vpop.f32.mrf.mxu0
        %v1845 = vadd.f32 %v1516, %v1844
        %1846 = vmatmul.bf16.gmra.mxu0 %v1189
        %v1847 = vpop.f32.mrf.mxu0
        %v1848 = vadd.f32 %v1519, %v1847
        %v1849 = vpop.f32.mrf.mxu0
        %v1850 = vadd.f32 %v1521, %v1849
        %1851 = vmatmul.bf16.gmra.mxu0 %v1192
        %v1852 = vpop.f32.mrf.mxu0
        %v1853 = vadd.f32 %v1524, %v1852
        %v1854 = vpop.f32.mrf.mxu0
        %v1855 = vadd.f32 %v1526, %v1854
        %1856 = vmatmul.bf16.gmra.mxu0 %v1195
        %v1857 = vpop.f32.mrf.mxu0
        %v1858 = vadd.f32 %v1529, %v1857
        %v1859 = vpop.f32.mrf.mxu0
        %v1860 = vadd.f32 %v1531, %v1859
        %1861 = vdwg.mxu0
        %v1862 = vld [vmem:[%s221] sm:$0x1]
        %v1863 = vperm.slane %v1862, 0
        %v1864 = vmul.f32 %v1543, %v1863
        %v1865 = vmul.f32 %v1545, %v1863
        %v1866 = vmul.f32 %v1548, %v1863
        %v1867 = vmul.f32 %v1550, %v1863
        %v1868 = vmul.f32 %v1553, %v1863
        %v1869 = vmul.f32 %v1555, %v1863
        %v1870 = vmul.f32 %v1558, %v1863
        %v1871 = vmul.f32 %v1560, %v1863
        %v1872 = vmul.f32 %v1563, %v1863
        %v1873 = vmul.f32 %v1565, %v1863
        %v1874 = vmul.f32 %v1568, %v1863
        %v1875 = vmul.f32 %v1570, %v1863
        %v1876 = vmul.f32 %v1573, %v1863
        %v1877 = vmul.f32 %v1575, %v1863
        %v1878 = vmul.f32 %v1578, %v1863
        %v1879 = vmul.f32 %v1580, %v1863
        %v1880 = vmul.f32 %v1583, %v1863
        %v1881 = vmul.f32 %v1585, %v1863
        %v1882 = vmul.f32 %v1588, %v1863
        %v1883 = vmul.f32 %v1590, %v1863
        %v1884 = vmul.f32 %v1593, %v1863
        %v1885 = vmul.f32 %v1595, %v1863
        %v1886 = vmul.f32 %v1598, %v1863
        %v1887 = vmul.f32 %v1600, %v1863
        %v1888 = vmul.f32 %v1603, %v1863
        %v1889 = vmul.f32 %v1605, %v1863
        %v1890 = vmul.f32 %v1608, %v1863
        %v1891 = vmul.f32 %v1610, %v1863
        %v1892 = vmul.f32 %v1613, %v1863
        %v1893 = vmul.f32 %v1615, %v1863
        %v1894 = vmul.f32 %v1618, %v1863
        %v1895 = vmul.f32 %v1620, %v1863
        %v1896 = vmul.f32 %v1623, %v1863
        %v1897 = vmul.f32 %v1625, %v1863
        %v1898 = vmul.f32 %v1628, %v1863
        %v1899 = vmul.f32 %v1630, %v1863
        %v1900 = vmul.f32 %v1633, %v1863
        %v1901 = vmul.f32 %v1635, %v1863
        %v1902 = vmul.f32 %v1638, %v1863
        %v1903 = vmul.f32 %v1640, %v1863
        %v1904 = vmul.f32 %v1643, %v1863
        %v1905 = vmul.f32 %v1645, %v1863
        %v1906 = vmul.f32 %v1648, %v1863
        %v1907 = vmul.f32 %v1650, %v1863
        %v1908 = vmul.f32 %v1653, %v1863
        %v1909 = vmul.f32 %v1655, %v1863
        %v1910 = vmul.f32 %v1658, %v1863
        %v1911 = vmul.f32 %v1660, %v1863
        %v1912 = vmul.f32 %v1663, %v1863
        %v1913 = vmul.f32 %v1665, %v1863
        %v1914 = vmul.f32 %v1668, %v1863
        %v1915 = vmul.f32 %v1670, %v1863
        %v1916 = vmul.f32 %v1673, %v1863
        %v1917 = vmul.f32 %v1675, %v1863
        %v1918 = vmul.f32 %v1678, %v1863
        %v1919 = vmul.f32 %v1680, %v1863
        %v1920 = vmul.f32 %v1683, %v1863
        %v1921 = vmul.f32 %v1685, %v1863
        %v1922 = vmul.f32 %v1688, %v1863
        %v1923 = vmul.f32 %v1690, %v1863
        %v1924 = vmul.f32 %v1693, %v1863
        %v1925 = vmul.f32 %v1695, %v1863
        %v1926 = vmul.f32 %v1698, %v1863
        %v1927 = vmul.f32 %v1700, %v1863
        %v1928 = vmul.f32 %v1703, %v1863
        %v1929 = vmul.f32 %v1705, %v1863
        %v1930 = vmul.f32 %v1708, %v1863
        %v1931 = vmul.f32 %v1710, %v1863
        %v1932 = vmul.f32 %v1713, %v1863
        %v1933 = vmul.f32 %v1715, %v1863
        %v1934 = vmul.f32 %v1718, %v1863
        %v1935 = vmul.f32 %v1720, %v1863
        %v1936 = vmul.f32 %v1723, %v1863
        %v1937 = vmul.f32 %v1725, %v1863
        %v1938 = vmul.f32 %v1728, %v1863
        %v1939 = vmul.f32 %v1730, %v1863
        %v1940 = vmul.f32 %v1733, %v1863
        %v1941 = vmul.f32 %v1735, %v1863
        %v1942 = vmul.f32 %v1738, %v1863
        %v1943 = vmul.f32 %v1740, %v1863
        %v1944 = vmul.f32 %v1743, %v1863
        %v1945 = vmul.f32 %v1745, %v1863
        %v1946 = vmul.f32 %v1748, %v1863
        %v1947 = vmul.f32 %v1750, %v1863
        %v1948 = vmul.f32 %v1753, %v1863
        %v1949 = vmul.f32 %v1755, %v1863
        %v1950 = vmul.f32 %v1758, %v1863
        %v1951 = vmul.f32 %v1760, %v1863
        %v1952 = vmul.f32 %v1763, %v1863
        %v1953 = vmul.f32 %v1765, %v1863
        %v1954 = vmul.f32 %v1768, %v1863
        %v1955 = vmul.f32 %v1770, %v1863
        %v1956 = vmul.f32 %v1773, %v1863
        %v1957 = vmul.f32 %v1775, %v1863
        %v1958 = vmul.f32 %v1778, %v1863
        %v1959 = vmul.f32 %v1780, %v1863
        %v1960 = vmul.f32 %v1783, %v1863
        %v1961 = vmul.f32 %v1785, %v1863
        %v1962 = vmul.f32 %v1788, %v1863
        %v1963 = vmul.f32 %v1790, %v1863
        %v1964 = vmul.f32 %v1793, %v1863
        %v1965 = vmul.f32 %v1795, %v1863
        %v1966 = vmul.f32 %v1798, %v1863
        %v1967 = vmul.f32 %v1800, %v1863
        %v1968 = vmul.f32 %v1803, %v1863
        %v1969 = vmul.f32 %v1805, %v1863
        %v1970 = vmul.f32 %v1808, %v1863
        %v1971 = vmul.f32 %v1810, %v1863
        %v1972 = vmul.f32 %v1813, %v1863
        %v1973 = vmul.f32 %v1815, %v1863
        %v1974 = vmul.f32 %v1818, %v1863
        %v1975 = vmul.f32 %v1820, %v1863
        %v1976 = vmul.f32 %v1823, %v1863
        %v1977 = vmul.f32 %v1825, %v1863
        %v1978 = vmul.f32 %v1828, %v1863
        %v1979 = vmul.f32 %v1830, %v1863
        %v1980 = vmul.f32 %v1833, %v1863
        %v1981 = vmul.f32 %v1835, %v1863
        %v1982 = vmul.f32 %v1838, %v1863
        %v1983 = vmul.f32 %v1840, %v1863
        %v1984 = vmul.f32 %v1843, %v1863
        %v1985 = vmul.f32 %v1845, %v1863
        %v1986 = vmul.f32 %v1848, %v1863
        %v1987 = vmul.f32 %v1850, %v1863
        %v1988 = vmul.f32 %v1853, %v1863
        %v1989 = vmul.f32 %v1855, %v1863
        %v1990 = vmul.f32 %v1858, %v1863
        %v1991 = vmul.f32 %v1860, %v1863
        %v1992 = vld [vmem:[%s221 + $0x1] sm:$0x1]
        %v1993 = vperm.slane %v1992, 0
        %v1994 = vadd.f32 %v1864, %v1993
        %v1995 = vadd.f32 %v1865, %v1993
        %v1996 = vadd.f32 %v1866, %v1993
        %v1997 = vadd.f32 %v1867, %v1993
        %v1998 = vadd.f32 %v1868, %v1993
        %v1999 = vadd.f32 %v1869, %v1993
        %v2000 = vadd.f32 %v1870, %v1993
        %v2001 = vadd.f32 %v1871, %v1993
        %v2002 = vadd.f32 %v1872, %v1993
        %v2003 = vadd.f32 %v1873, %v1993
        %v2004 = vadd.f32 %v1874, %v1993
        %v2005 = vadd.f32 %v1875, %v1993
        %v2006 = vadd.f32 %v1876, %v1993
        %v2007 = vadd.f32 %v1877, %v1993
        %v2008 = vadd.f32 %v1878, %v1993
        %v2009 = vadd.f32 %v1879, %v1993
        %v2010 = vadd.f32 %v1880, %v1993
        %v2011 = vadd.f32 %v1881, %v1993
        %v2012 = vadd.f32 %v1882, %v1993
        %v2013 = vadd.f32 %v1883, %v1993
        %v2014 = vadd.f32 %v1884, %v1993
        %v2015 = vadd.f32 %v1885, %v1993
        %v2016 = vadd.f32 %v1886, %v1993
        %v2017 = vadd.f32 %v1887, %v1993
        %v2018 = vadd.f32 %v1888, %v1993
        %v2019 = vadd.f32 %v1889, %v1993
        %v2020 = vadd.f32 %v1890, %v1993
        %v2021 = vadd.f32 %v1891, %v1993
        %v2022 = vadd.f32 %v1892, %v1993
        %v2023 = vadd.f32 %v1893, %v1993
        %v2024 = vadd.f32 %v1894, %v1993
        %v2025 = vadd.f32 %v1895, %v1993
        %v2026 = vadd.f32 %v1896, %v1993
        %v2027 = vadd.f32 %v1897, %v1993
        %v2028 = vadd.f32 %v1898, %v1993
        %v2029 = vadd.f32 %v1899, %v1993
        %v2030 = vadd.f32 %v1900, %v1993
        %v2031 = vadd.f32 %v1901, %v1993
        %v2032 = vadd.f32 %v1902, %v1993
        %v2033 = vadd.f32 %v1903, %v1993
        %v2034 = vadd.f32 %v1904, %v1993
        %v2035 = vadd.f32 %v1905, %v1993
        %v2036 = vadd.f32 %v1906, %v1993
        %v2037 = vadd.f32 %v1907, %v1993
        %v2038 = vadd.f32 %v1908, %v1993
        %v2039 = vadd.f32 %v1909, %v1993
        %v2040 = vadd.f32 %v1910, %v1993
        %v2041 = vadd.f32 %v1911, %v1993
        %v2042 = vadd.f32 %v1912, %v1993
        %v2043 = vadd.f32 %v1913, %v1993
        %v2044 = vadd.f32 %v1914, %v1993
        %v2045 = vadd.f32 %v1915, %v1993
        %v2046 = vadd.f32 %v1916, %v1993
        %v2047 = vadd.f32 %v1917, %v1993
        %v2048 = vadd.f32 %v1918, %v1993
        %v2049 = vadd.f32 %v1919, %v1993
        %v2050 = vadd.f32 %v1920, %v1993
        %v2051 = vadd.f32 %v1921, %v1993
        %v2052 = vadd.f32 %v1922, %v1993
        %v2053 = vadd.f32 %v1923, %v1993
        %v2054 = vadd.f32 %v1924, %v1993
        %v2055 = vadd.f32 %v1925, %v1993
        %v2056 = vadd.f32 %v1926, %v1993
        %v2057 = vadd.f32 %v1927, %v1993
        %v2058 = vadd.f32 %v1928, %v1993
        %v2059 = vadd.f32 %v1929, %v1993
        %v2060 = vadd.f32 %v1930, %v1993
        %v2061 = vadd.f32 %v1931, %v1993
        %v2062 = vadd.f32 %v1932, %v1993
        %v2063 = vadd.f32 %v1933, %v1993
        %v2064 = vadd.f32 %v1934, %v1993
        %v2065 = vadd.f32 %v1935, %v1993
        %v2066 = vadd.f32 %v1936, %v1993
        %v2067 = vadd.f32 %v1937, %v1993
        %v2068 = vadd.f32 %v1938, %v1993
        %v2069 = vadd.f32 %v1939, %v1993
        %v2070 = vadd.f32 %v1940, %v1993
        %v2071 = vadd.f32 %v1941, %v1993
        %v2072 = vadd.f32 %v1942, %v1993
        %v2073 = vadd.f32 %v1943, %v1993
        %v2074 = vadd.f32 %v1944, %v1993
        %v2075 = vadd.f32 %v1945, %v1993
        %v2076 = vadd.f32 %v1946, %v1993
        %v2077 = vadd.f32 %v1947, %v1993
        %v2078 = vadd.f32 %v1948, %v1993
        %v2079 = vadd.f32 %v1949, %v1993
        %v2080 = vadd.f32 %v1950, %v1993
        %v2081 = vadd.f32 %v1951, %v1993
        %v2082 = vadd.f32 %v1952, %v1993
        %v2083 = vadd.f32 %v1953, %v1993
        %v2084 = vadd.f32 %v1954, %v1993
        %v2085 = vadd.f32 %v1955, %v1993
        %v2086 = vadd.f32 %v1956, %v1993
        %v2087 = vadd.f32 %v1957, %v1993
        %v2088 = vadd.f32 %v1958, %v1993
        %v2089 = vadd.f32 %v1959, %v1993
        %v2090 = vadd.f32 %v1960, %v1993
        %v2091 = vadd.f32 %v1961, %v1993
        %v2092 = vadd.f32 %v1962, %v1993
        %v2093 = vadd.f32 %v1963, %v1993
        %v2094 = vadd.f32 %v1964, %v1993
        %v2095 = vadd.f32 %v1965, %v1993
        %v2096 = vadd.f32 %v1966, %v1993
        %v2097 = vadd.f32 %v1967, %v1993
        %v2098 = vadd.f32 %v1968, %v1993
        %v2099 = vadd.f32 %v1969, %v1993
        %v2100 = vadd.f32 %v1970, %v1993
        %v2101 = vadd.f32 %v1971, %v1993
        %v2102 = vadd.f32 %v1972, %v1993
        %v2103 = vadd.f32 %v1973, %v1993
        %v2104 = vadd.f32 %v1974, %v1993
        %v2105 = vadd.f32 %v1975, %v1993
        %v2106 = vadd.f32 %v1976, %v1993
        %v2107 = vadd.f32 %v1977, %v1993
        %v2108 = vadd.f32 %v1978, %v1993
        %v2109 = vadd.f32 %v1979, %v1993
        %v2110 = vadd.f32 %v1980, %v1993
        %v2111 = vadd.f32 %v1981, %v1993
        %v2112 = vadd.f32 %v1982, %v1993
        %v2113 = vadd.f32 %v1983, %v1993
        %v2114 = vadd.f32 %v1984, %v1993
        %v2115 = vadd.f32 %v1985, %v1993
        %v2116 = vadd.f32 %v1986, %v1993
        %v2117 = vadd.f32 %v1987, %v1993
        %v2118 = vadd.f32 %v1988, %v1993
        %v2119 = vadd.f32 %v1989, %v1993
        %v2120 = vadd.f32 %v1990, %v1993
        %v2121 = vadd.f32 %v1991, %v1993
        %v2122 = vmax.f32 %v1994, 0.0
        %v2123 = vmax.f32 %v1995, 0.0
        %v2124 = vmax.f32 %v1996, 0.0
        %v2125 = vmax.f32 %v1997, 0.0
        %v2126 = vmax.f32 %v1998, 0.0
        %v2127 = vmax.f32 %v1999, 0.0
        %v2128 = vmax.f32 %v2000, 0.0
        %v2129 = vmax.f32 %v2001, 0.0
        %v2130 = vmax.f32 %v2002, 0.0
        %v2131 = vmax.f32 %v2003, 0.0
        %v2132 = vmax.f32 %v2004, 0.0
        %v2133 = vmax.f32 %v2005, 0.0
        %v2134 = vmax.f32 %v2006, 0.0
        %v2135 = vmax.f32 %v2007, 0.0
        %v2136 = vmax.f32 %v2008, 0.0
        %v2137 = vmax.f32 %v2009, 0.0
        %v2138 = vmax.f32 %v2010, 0.0
        %v2139 = vmax.f32 %v2011, 0.0
        %v2140 = vmax.f32 %v2012, 0.0
        %v2141 = vmax.f32 %v2013, 0.0
        %v2142 = vmax.f32 %v2014, 0.0
        %v2143 = vmax.f32 %v2015, 0.0
        %v2144 = vmax.f32 %v2016, 0.0
        %v2145 = vmax.f32 %v2017, 0.0
        %v2146 = vmax.f32 %v2018, 0.0
        %v2147 = vmax.f32 %v2019, 0.0
        %v2148 = vmax.f32 %v2020, 0.0
        %v2149 = vmax.f32 %v2021, 0.0
        %v2150 = vmax.f32 %v2022, 0.0
        %v2151 = vmax.f32 %v2023, 0.0
        %v2152 = vmax.f32 %v2024, 0.0
        %v2153 = vmax.f32 %v2025, 0.0
        %v2154 = vmax.f32 %v2026, 0.0
        %v2155 = vmax.f32 %v2027, 0.0
        %v2156 = vmax.f32 %v2028, 0.0
        %v2157 = vmax.f32 %v2029, 0.0
        %v2158 = vmax.f32 %v2030, 0.0
        %v2159 = vmax.f32 %v2031, 0.0
        %v2160 = vmax.f32 %v2032, 0.0
        %v2161 = vmax.f32 %v2033, 0.0
        %v2162 = vmax.f32 %v2034, 0.0
        %v2163 = vmax.f32 %v2035, 0.0
        %v2164 = vmax.f32 %v2036, 0.0
        %v2165 = vmax.f32 %v2037, 0.0
        %v2166 = vmax.f32 %v2038, 0.0
        %v2167 = vmax.f32 %v2039, 0.0
        %v2168 = vmax.f32 %v2040, 0.0
        %v2169 = vmax.f32 %v2041, 0.0
        %v2170 = vmax.f32 %v2042, 0.0
        %v2171 = vmax.f32 %v2043, 0.0
        %v2172 = vmax.f32 %v2044, 0.0
        %v2173 = vmax.f32 %v2045, 0.0
        %v2174 = vmax.f32 %v2046, 0.0
        %v2175 = vmax.f32 %v2047, 0.0
        %v2176 = vmax.f32 %v2048, 0.0
        %v2177 = vmax.f32 %v2049, 0.0
        %v2178 = vmax.f32 %v2050, 0.0
        %v2179 = vmax.f32 %v2051, 0.0
        %v2180 = vmax.f32 %v2052, 0.0
        %v2181 = vmax.f32 %v2053, 0.0
        %v2182 = vmax.f32 %v2054, 0.0
        %v2183 = vmax.f32 %v2055, 0.0
        %v2184 = vmax.f32 %v2056, 0.0
        %v2185 = vmax.f32 %v2057, 0.0
        %v2186 = vmax.f32 %v2058, 0.0
        %v2187 = vmax.f32 %v2059, 0.0
        %v2188 = vmax.f32 %v2060, 0.0
        %v2189 = vmax.f32 %v2061, 0.0
        %v2190 = vmax.f32 %v2062, 0.0
        %v2191 = vmax.f32 %v2063, 0.0
        %v2192 = vmax.f32 %v2064, 0.0
        %v2193 = vmax.f32 %v2065, 0.0
        %v2194 = vmax.f32 %v2066, 0.0
        %v2195 = vmax.f32 %v2067, 0.0
        %v2196 = vmax.f32 %v2068, 0.0
        %v2197 = vmax.f32 %v2069, 0.0
        %v2198 = vmax.f32 %v2070, 0.0
        %v2199 = vmax.f32 %v2071, 0.0
        %v2200 = vmax.f32 %v2072, 0.0
        %v2201 = vmax.f32 %v2073, 0.0
        %v2202 = vmax.f32 %v2074, 0.0
        %v2203 = vmax.f32 %v2075, 0.0
        %v2204 = vmax.f32 %v2076, 0.0
        %v2205 = vmax.f32 %v2077, 0.0
        %v2206 = vmax.f32 %v2078, 0.0
        %v2207 = vmax.f32 %v2079, 0.0
        %v2208 = vmax.f32 %v2080, 0.0
        %v2209 = vmax.f32 %v2081, 0.0
        %v2210 = vmax.f32 %v2082, 0.0
        %v2211 = vmax.f32 %v2083, 0.0
        %v2212 = vmax.f32 %v2084, 0.0
        %v2213 = vmax.f32 %v2085, 0.0
        %v2214 = vmax.f32 %v2086, 0.0
        %v2215 = vmax.f32 %v2087, 0.0
        %v2216 = vmax.f32 %v2088, 0.0
        %v2217 = vmax.f32 %v2089, 0.0
        %v2218 = vmax.f32 %v2090, 0.0
        %v2219 = vmax.f32 %v2091, 0.0
        %v2220 = vmax.f32 %v2092, 0.0
        %v2221 = vmax.f32 %v2093, 0.0
        %v2222 = vmax.f32 %v2094, 0.0
        %v2223 = vmax.f32 %v2095, 0.0
        %v2224 = vmax.f32 %v2096, 0.0
        %v2225 = vmax.f32 %v2097, 0.0
        %v2226 = vmax.f32 %v2098, 0.0
        %v2227 = vmax.f32 %v2099, 0.0
        %v2228 = vmax.f32 %v2100, 0.0
        %v2229 = vmax.f32 %v2101, 0.0
        %v2230 = vmax.f32 %v2102, 0.0
        %v2231 = vmax.f32 %v2103, 0.0
        %v2232 = vmax.f32 %v2104, 0.0
        %v2233 = vmax.f32 %v2105, 0.0
        %v2234 = vmax.f32 %v2106, 0.0
        %v2235 = vmax.f32 %v2107, 0.0
        %v2236 = vmax.f32 %v2108, 0.0
        %v2237 = vmax.f32 %v2109, 0.0
        %v2238 = vmax.f32 %v2110, 0.0
        %v2239 = vmax.f32 %v2111, 0.0
        %v2240 = vmax.f32 %v2112, 0.0
        %v2241 = vmax.f32 %v2113, 0.0
        %v2242 = vmax.f32 %v2114, 0.0
        %v2243 = vmax.f32 %v2115, 0.0
        %v2244 = vmax.f32 %v2116, 0.0
        %v2245 = vmax.f32 %v2117, 0.0
        %v2246 = vmax.f32 %v2118, 0.0
        %v2247 = vmax.f32 %v2119, 0.0
        %v2248 = vmax.f32 %v2120, 0.0
        %v2249 = vmax.f32 %v2121, 0.0
        %v2250 = vpack.c.bf16 %v2122, %v2122
        %v2251 = vpack.c.bf16 %v2123, %v2123
        %v2252 = vpack.c.bf16 %v2124, %v2124
        %v2253 = vpack.c.bf16 %v2125, %v2125
        %v2254 = vpack.c.bf16 %v2126, %v2126
        %v2255 = vpack.c.bf16 %v2127, %v2127
        %v2256 = vpack.c.bf16 %v2128, %v2128
        %v2257 = vpack.c.bf16 %v2129, %v2129
        %v2258 = vpack.c.bf16 %v2130, %v2130
        %v2259 = vpack.c.bf16 %v2131, %v2131
        %v2260 = vpack.c.bf16 %v2132, %v2132
        %v2261 = vpack.c.bf16 %v2133, %v2133
        %v2262 = vpack.c.bf16 %v2134, %v2134
        %v2263 = vpack.c.bf16 %v2135, %v2135
        %v2264 = vpack.c.bf16 %v2136, %v2136
        %v2265 = vpack.c.bf16 %v2137, %v2137
        %v2266 = vpack.c.bf16 %v2138, %v2138
        %v2267 = vpack.c.bf16 %v2139, %v2139
        %v2268 = vpack.c.bf16 %v2140, %v2140
        %v2269 = vpack.c.bf16 %v2141, %v2141
        %v2270 = vpack.c.bf16 %v2142, %v2142
        %v2271 = vpack.c.bf16 %v2143, %v2143
        %v2272 = vpack.c.bf16 %v2144, %v2144
        %v2273 = vpack.c.bf16 %v2145, %v2145
        %v2274 = vpack.c.bf16 %v2146, %v2146
        %v2275 = vpack.c.bf16 %v2147, %v2147
        %v2276 = vpack.c.bf16 %v2148, %v2148
        %v2277 = vpack.c.bf16 %v2149, %v2149
        %v2278 = vpack.c.bf16 %v2150, %v2150
        %v2279 = vpack.c.bf16 %v2151, %v2151
        %v2280 = vpack.c.bf16 %v2152, %v2152
        %v2281 = vpack.c.bf16 %v2153, %v2153
        %v2282 = vpack.c.bf16 %v2154, %v2154
        %v2283 = vpack.c.bf16 %v2155, %v2155
        %v2284 = vpack.c.bf16 %v2156, %v2156
        %v2285 = vpack.c.bf16 %v2157, %v2157
        %v2286 = vpack.c.bf16 %v2158, %v2158
        %v2287 = vpack.c.bf16 %v2159, %v2159
        %v2288 = vpack.c.bf16 %v2160, %v2160
        %v2289 = vpack.c.bf16 %v2161, %v2161
        %v2290 = vpack.c.bf16 %v2162, %v2162
        %v2291 = vpack.c.bf16 %v2163, %v2163
        %v2292 = vpack.c.bf16 %v2164, %v2164
        %v2293 = vpack.c.bf16 %v2165, %v2165
        %v2294 = vpack.c.bf16 %v2166, %v2166
        %v2295 = vpack.c.bf16 %v2167, %v2167
        %v2296 = vpack.c.bf16 %v2168, %v2168
        %v2297 = vpack.c.bf16 %v2169, %v2169
        %v2298 = vpack.c.bf16 %v2170, %v2170
        %v2299 = vpack.c.bf16 %v2171, %v2171
        %v2300 = vpack.c.bf16 %v2172, %v2172
        %v2301 = vpack.c.bf16 %v2173, %v2173
        %v2302 = vpack.c.bf16 %v2174, %v2174
        %v2303 = vpack.c.bf16 %v2175, %v2175
        %v2304 = vpack.c.bf16 %v2176, %v2176
        %v2305 = vpack.c.bf16 %v2177, %v2177
        %v2306 = vpack.c.bf16 %v2178, %v2178
        %v2307 = vpack.c.bf16 %v2179, %v2179
        %v2308 = vpack.c.bf16 %v2180, %v2180
        %v2309 = vpack.c.bf16 %v2181, %v2181
        %v2310 = vpack.c.bf16 %v2182, %v2182
        %v2311 = vpack.c.bf16 %v2183, %v2183
        %v2312 = vpack.c.bf16 %v2184, %v2184
        %v2313 = vpack.c.bf16 %v2185, %v2185
        %v2314 = vpack.c.bf16 %v2186, %v2186
        %v2315 = vpack.c.bf16 %v2187, %v2187
        %v2316 = vpack.c.bf16 %v2188, %v2188
        %v2317 = vpack.c.bf16 %v2189, %v2189
        %v2318 = vpack.c.bf16 %v2190, %v2190
        %v2319 = vpack.c.bf16 %v2191, %v2191
        %v2320 = vpack.c.bf16 %v2192, %v2192
        %v2321 = vpack.c.bf16 %v2193, %v2193
        %v2322 = vpack.c.bf16 %v2194, %v2194
        %v2323 = vpack.c.bf16 %v2195, %v2195
        %v2324 = vpack.c.bf16 %v2196, %v2196
        %v2325 = vpack.c.bf16 %v2197, %v2197
        %v2326 = vpack.c.bf16 %v2198, %v2198
        %v2327 = vpack.c.bf16 %v2199, %v2199
        %v2328 = vpack.c.bf16 %v2200, %v2200
        %v2329 = vpack.c.bf16 %v2201, %v2201
        %v2330 = vpack.c.bf16 %v2202, %v2202
        %v2331 = vpack.c.bf16 %v2203, %v2203
        %v2332 = vpack.c.bf16 %v2204, %v2204
        %v2333 = vpack.c.bf16 %v2205, %v2205
        %v2334 = vpack.c.bf16 %v2206, %v2206
        %v2335 = vpack.c.bf16 %v2207, %v2207
        %v2336 = vpack.c.bf16 %v2208, %v2208
        %v2337 = vpack.c.bf16 %v2209, %v2209
        %v2338 = vpack.c.bf16 %v2210, %v2210
        %v2339 = vpack.c.bf16 %v2211, %v2211
        %v2340 = vpack.c.bf16 %v2212, %v2212
        %v2341 = vpack.c.bf16 %v2213, %v2213
        %v2342 = vpack.c.bf16 %v2214, %v2214
        %v2343 = vpack.c.bf16 %v2215, %v2215
        %v2344 = vpack.c.bf16 %v2216, %v2216
        %v2345 = vpack.c.bf16 %v2217, %v2217
        %v2346 = vpack.c.bf16 %v2218, %v2218
        %v2347 = vpack.c.bf16 %v2219, %v2219
        %v2348 = vpack.c.bf16 %v2220, %v2220
        %v2349 = vpack.c.bf16 %v2221, %v2221
        %v2350 = vpack.c.bf16 %v2222, %v2222
        %v2351 = vpack.c.bf16 %v2223, %v2223
        %v2352 = vpack.c.bf16 %v2224, %v2224
        %v2353 = vpack.c.bf16 %v2225, %v2225
        %v2354 = vpack.c.bf16 %v2226, %v2226
        %v2355 = vpack.c.bf16 %v2227, %v2227
        %v2356 = vpack.c.bf16 %v2228, %v2228
        %v2357 = vpack.c.bf16 %v2229, %v2229
        %v2358 = vpack.c.bf16 %v2230, %v2230
        %v2359 = vpack.c.bf16 %v2231, %v2231
        %v2360 = vpack.c.bf16 %v2232, %v2232
        %v2361 = vpack.c.bf16 %v2233, %v2233
        %v2362 = vpack.c.bf16 %v2234, %v2234
        %v2363 = vpack.c.bf16 %v2235, %v2235
        %v2364 = vpack.c.bf16 %v2236, %v2236
        %v2365 = vpack.c.bf16 %v2237, %v2237
        %v2366 = vpack.c.bf16 %v2238, %v2238
        %v2367 = vpack.c.bf16 %v2239, %v2239
        %v2368 = vpack.c.bf16 %v2240, %v2240
        %v2369 = vpack.c.bf16 %v2241, %v2241
        %v2370 = vpack.c.bf16 %v2242, %v2242
        %v2371 = vpack.c.bf16 %v2243, %v2243
        %v2372 = vpack.c.bf16 %v2244, %v2244
        %v2373 = vpack.c.bf16 %v2245, %v2245
        %v2374 = vpack.c.bf16 %v2246, %v2246
        %v2375 = vpack.c.bf16 %v2247, %v2247
        %v2376 = vpack.c.bf16 %v2248, %v2248
        %v2377 = vpack.c.bf16 %v2249, %v2249
        %vm2378 = vcmask 519168
        %2379 = vst.msk [vmem:[%s206] sm:$0xf] %vm2378, %v2250
        %2380 = vst.msk [vmem:[%s206 + $0x4] sm:$0xf] %vm2378, %v2251
        %2381 = vst.msk [vmem:[%s206 + $0x8] sm:$0xf] %vm2378, %v2252
        %2382 = vst.msk [vmem:[%s206 + $0xc] sm:$0xf] %vm2378, %v2253
        %2383 = vst.msk [vmem:[%s206 + $0x10] sm:$0xf] %vm2378, %v2254
        %2384 = vst.msk [vmem:[%s206 + $0x14] sm:$0xf] %vm2378, %v2255
        %2385 = vst.msk [vmem:[%s206 + $0x18] sm:$0xf] %vm2378, %v2256
        %2386 = vst.msk [vmem:[%s206 + $0x1c] sm:$0xf] %vm2378, %v2257
        %2387 = vst.msk [vmem:[%s206 + $0x20] sm:$0xf] %vm2378, %v2258
        %2388 = vst.msk [vmem:[%s206 + $0x24] sm:$0xf] %vm2378, %v2259
        %2389 = vst.msk [vmem:[%s206 + $0x28] sm:$0xf] %vm2378, %v2260
        %2390 = vst.msk [vmem:[%s206 + $0x2c] sm:$0xf] %vm2378, %v2261
        %2391 = vst.msk [vmem:[%s206 + $0x30] sm:$0xf] %vm2378, %v2262
        %2392 = vst.msk [vmem:[%s206 + $0x34] sm:$0xf] %vm2378, %v2263
        %2393 = vst.msk [vmem:[%s206 + $0x38] sm:$0xf] %vm2378, %v2264
        %2394 = vst.msk [vmem:[%s206 + $0x3c] sm:$0xf] %vm2378, %v2265
        %2395 = vst.msk [vmem:[%s206 + $0x40] sm:$0xf] %vm2378, %v2266
        %2396 = vst.msk [vmem:[%s206 + $0x44] sm:$0xf] %vm2378, %v2267
        %2397 = vst.msk [vmem:[%s206 + $0x48] sm:$0xf] %vm2378, %v2268
        %2398 = vst.msk [vmem:[%s206 + $0x4c] sm:$0xf] %vm2378, %v2269
        %2399 = vst.msk [vmem:[%s206 + $0x50] sm:$0xf] %vm2378, %v2270
        %2400 = vst.msk [vmem:[%s206 + $0x54] sm:$0xf] %vm2378, %v2271
        %2401 = vst.msk [vmem:[%s206 + $0x58] sm:$0xf] %vm2378, %v2272
        %2402 = vst.msk [vmem:[%s206 + $0x5c] sm:$0xf] %vm2378, %v2273
        %2403 = vst.msk [vmem:[%s206 + $0x60] sm:$0xf] %vm2378, %v2274
        %2404 = vst.msk [vmem:[%s206 + $0x64] sm:$0xf] %vm2378, %v2275
        %2405 = vst.msk [vmem:[%s206 + $0x68] sm:$0xf] %vm2378, %v2276
        %2406 = vst.msk [vmem:[%s206 + $0x6c] sm:$0xf] %vm2378, %v2277
        %2407 = vst.msk [vmem:[%s206 + $0x70] sm:$0xf] %vm2378, %v2278
        %2408 = vst.msk [vmem:[%s206 + $0x74] sm:$0xf] %vm2378, %v2279
        %2409 = vst.msk [vmem:[%s206 + $0x78] sm:$0xf] %vm2378, %v2280
        %2410 = vst.msk [vmem:[%s206 + $0x7c] sm:$0xf] %vm2378, %v2281
        %2411 = vst.msk [vmem:[%s206 + $0x80] sm:$0xf] %vm2378, %v2282
        %2412 = vst.msk [vmem:[%s206 + $0x84] sm:$0xf] %vm2378, %v2283
        %2413 = vst.msk [vmem:[%s206 + $0x88] sm:$0xf] %vm2378, %v2284
        %2414 = vst.msk [vmem:[%s206 + $0x8c] sm:$0xf] %vm2378, %v2285
        %2415 = vst.msk [vmem:[%s206 + $0x90] sm:$0xf] %vm2378, %v2286
        %2416 = vst.msk [vmem:[%s206 + $0x94] sm:$0xf] %vm2378, %v2287
        %2417 = vst.msk [vmem:[%s206 + $0x98] sm:$0xf] %vm2378, %v2288
        %2418 = vst.msk [vmem:[%s206 + $0x9c] sm:$0xf] %vm2378, %v2289
        %2419 = vst.msk [vmem:[%s206 + $0xa0] sm:$0xf] %vm2378, %v2290
        %2420 = vst.msk [vmem:[%s206 + $0xa4] sm:$0xf] %vm2378, %v2291
        %2421 = vst.msk [vmem:[%s206 + $0xa8] sm:$0xf] %vm2378, %v2292
        %2422 = vst.msk [vmem:[%s206 + $0xac] sm:$0xf] %vm2378, %v2293
        %2423 = vst.msk [vmem:[%s206 + $0xb0] sm:$0xf] %vm2378, %v2294
        %2424 = vst.msk [vmem:[%s206 + $0xb4] sm:$0xf] %vm2378, %v2295
        %2425 = vst.msk [vmem:[%s206 + $0xb8] sm:$0xf] %vm2378, %v2296
        %2426 = vst.msk [vmem:[%s206 + $0xbc] sm:$0xf] %vm2378, %v2297
        %2427 = vst.msk [vmem:[%s206 + $0xc0] sm:$0xf] %vm2378, %v2298
        %2428 = vst.msk [vmem:[%s206 + $0xc4] sm:$0xf] %vm2378, %v2299
        %2429 = vst.msk [vmem:[%s206 + $0xc8] sm:$0xf] %vm2378, %v2300
        %2430 = vst.msk [vmem:[%s206 + $0xcc] sm:$0xf] %vm2378, %v2301
        %2431 = vst.msk [vmem:[%s206 + $0xd0] sm:$0xf] %vm2378, %v2302
        %2432 = vst.msk [vmem:[%s206 + $0xd4] sm:$0xf] %vm2378, %v2303
        %2433 = vst.msk [vmem:[%s206 + $0xd8] sm:$0xf] %vm2378, %v2304
        %2434 = vst.msk [vmem:[%s206 + $0xdc] sm:$0xf] %vm2378, %v2305
        %2435 = vst.msk [vmem:[%s206 + $0xe0] sm:$0xf] %vm2378, %v2306
        %2436 = vst.msk [vmem:[%s206 + $0xe4] sm:$0xf] %vm2378, %v2307
        %2437 = vst.msk [vmem:[%s206 + $0xe8] sm:$0xf] %vm2378, %v2308
        %2438 = vst.msk [vmem:[%s206 + $0xec] sm:$0xf] %vm2378, %v2309
        %2439 = vst.msk [vmem:[%s206 + $0xf0] sm:$0xf] %vm2378, %v2310
        %2440 = vst.msk [vmem:[%s206 + $0xf4] sm:$0xf] %vm2378, %v2311
        %2441 = vst.msk [vmem:[%s206 + $0xf8] sm:$0xf] %vm2378, %v2312
        %2442 = vst.msk [vmem:[%s206 + $0xfc] sm:$0xf] %vm2378, %v2313
        %2443 = vst.msk [vmem:[%s206 + $0x100] sm:$0xf] %vm2378, %v2314
        %2444 = vst.msk [vmem:[%s206 + $0x104] sm:$0xf] %vm2378, %v2315
        %2445 = vst.msk [vmem:[%s206 + $0x108] sm:$0xf] %vm2378, %v2316
        %2446 = vst.msk [vmem:[%s206 + $0x10c] sm:$0xf] %vm2378, %v2317
        %2447 = vst.msk [vmem:[%s206 + $0x110] sm:$0xf] %vm2378, %v2318
        %2448 = vst.msk [vmem:[%s206 + $0x114] sm:$0xf] %vm2378, %v2319
        %2449 = vst.msk [vmem:[%s206 + $0x118] sm:$0xf] %vm2378, %v2320
        %2450 = vst.msk [vmem:[%s206 + $0x11c] sm:$0xf] %vm2378, %v2321
        %2451 = vst.msk [vmem:[%s206 + $0x120] sm:$0xf] %vm2378, %v2322
        %2452 = vst.msk [vmem:[%s206 + $0x124] sm:$0xf] %vm2378, %v2323
        %2453 = vst.msk [vmem:[%s206 + $0x128] sm:$0xf] %vm2378, %v2324
        %2454 = vst.msk [vmem:[%s206 + $0x12c] sm:$0xf] %vm2378, %v2325
        %2455 = vst.msk [vmem:[%s206 + $0x130] sm:$0xf] %vm2378, %v2326
        %2456 = vst.msk [vmem:[%s206 + $0x134] sm:$0xf] %vm2378, %v2327
        %2457 = vst.msk [vmem:[%s206 + $0x138] sm:$0xf] %vm2378, %v2328
        %2458 = vst.msk [vmem:[%s206 + $0x13c] sm:$0xf] %vm2378, %v2329
        %2459 = vst.msk [vmem:[%s206 + $0x140] sm:$0xf] %vm2378, %v2330
        %2460 = vst.msk [vmem:[%s206 + $0x144] sm:$0xf] %vm2378, %v2331
        %2461 = vst.msk [vmem:[%s206 + $0x148] sm:$0xf] %vm2378, %v2332
        %2462 = vst.msk [vmem:[%s206 + $0x14c] sm:$0xf] %vm2378, %v2333
        %2463 = vst.msk [vmem:[%s206 + $0x150] sm:$0xf] %vm2378, %v2334
        %2464 = vst.msk [vmem:[%s206 + $0x154] sm:$0xf] %vm2378, %v2335
        %2465 = vst.msk [vmem:[%s206 + $0x158] sm:$0xf] %vm2378, %v2336
        %2466 = vst.msk [vmem:[%s206 + $0x15c] sm:$0xf] %vm2378, %v2337
        %2467 = vst.msk [vmem:[%s206 + $0x160] sm:$0xf] %vm2378, %v2338
        %2468 = vst.msk [vmem:[%s206 + $0x164] sm:$0xf] %vm2378, %v2339
        %2469 = vst.msk [vmem:[%s206 + $0x168] sm:$0xf] %vm2378, %v2340
        %2470 = vst.msk [vmem:[%s206 + $0x16c] sm:$0xf] %vm2378, %v2341
        %2471 = vst.msk [vmem:[%s206 + $0x170] sm:$0xf] %vm2378, %v2342
        %2472 = vst.msk [vmem:[%s206 + $0x174] sm:$0xf] %vm2378, %v2343
        %2473 = vst.msk [vmem:[%s206 + $0x178] sm:$0xf] %vm2378, %v2344
        %2474 = vst.msk [vmem:[%s206 + $0x17c] sm:$0xf] %vm2378, %v2345
        %2475 = vst.msk [vmem:[%s206 + $0x180] sm:$0xf] %vm2378, %v2346
        %2476 = vst.msk [vmem:[%s206 + $0x184] sm:$0xf] %vm2378, %v2347
        %2477 = vst.msk [vmem:[%s206 + $0x188] sm:$0xf] %vm2378, %v2348
        %2478 = vst.msk [vmem:[%s206 + $0x18c] sm:$0xf] %vm2378, %v2349
        %2479 = vst.msk [vmem:[%s206 + $0x190] sm:$0xf] %vm2378, %v2350
        %2480 = vst.msk [vmem:[%s206 + $0x194] sm:$0xf] %vm2378, %v2351
        %2481 = vst.msk [vmem:[%s206 + $0x198] sm:$0xf] %vm2378, %v2352
        %2482 = vst.msk [vmem:[%s206 + $0x19c] sm:$0xf] %vm2378, %v2353
        %2483 = vst.msk [vmem:[%s206 + $0x1a0] sm:$0xf] %vm2378, %v2354
        %2484 = vst.msk [vmem:[%s206 + $0x1a4] sm:$0xf] %vm2378, %v2355
        %2485 = vst.msk [vmem:[%s206 + $0x1a8] sm:$0xf] %vm2378, %v2356
        %2486 = vst.msk [vmem:[%s206 + $0x1ac] sm:$0xf] %vm2378, %v2357
        %2487 = vst.msk [vmem:[%s206 + $0x1b0] sm:$0xf] %vm2378, %v2358
        %2488 = vst.msk [vmem:[%s206 + $0x1b4] sm:$0xf] %vm2378, %v2359
        %2489 = vst.msk [vmem:[%s206 + $0x1b8] sm:$0xf] %vm2378, %v2360
        %2490 = vst.msk [vmem:[%s206 + $0x1bc] sm:$0xf] %vm2378, %v2361
        %2491 = vst.msk [vmem:[%s206 + $0x1c0] sm:$0xf] %vm2378, %v2362
        %2492 = vst.msk [vmem:[%s206 + $0x1c4] sm:$0xf] %vm2378, %v2363
        %2493 = vst.msk [vmem:[%s206 + $0x1c8] sm:$0xf] %vm2378, %v2364
        %2494 = vst.msk [vmem:[%s206 + $0x1cc] sm:$0xf] %vm2378, %v2365
        %2495 = vst.msk [vmem:[%s206 + $0x1d0] sm:$0xf] %vm2378, %v2366
        %2496 = vst.msk [vmem:[%s206 + $0x1d4] sm:$0xf] %vm2378, %v2367
        %2497 = vst.msk [vmem:[%s206 + $0x1d8] sm:$0xf] %vm2378, %v2368
        %2498 = vst.msk [vmem:[%s206 + $0x1dc] sm:$0xf] %vm2378, %v2369
        %2499 = vst.msk [vmem:[%s206 + $0x1e0] sm:$0xf] %vm2378, %v2370
        %2500 = vst.msk [vmem:[%s206 + $0x1e4] sm:$0xf] %vm2378, %v2371
        %2501 = vst.msk [vmem:[%s206 + $0x1e8] sm:$0xf] %vm2378, %v2372
        %2502 = vst.msk [vmem:[%s206 + $0x1ec] sm:$0xf] %vm2378, %v2373
        %2503 = vst.msk [vmem:[%s206 + $0x1f0] sm:$0xf] %vm2378, %v2374
        %2504 = vst.msk [vmem:[%s206 + $0x1f4] sm:$0xf] %vm2378, %v2375
        %2505 = vst.msk [vmem:[%s206 + $0x1f8] sm:$0xf] %vm2378, %v2376
        %2506 = vst.msk [vmem:[%s206 + $0x1fc] sm:$0xf] %vm2378, %v2377
        %s2507 = sand.u32 %s117, 1
        %s2508 = scalar_lea.sflag [#allocation3], %s2507
        %s2509 = sand.u32 %s117, 1
        %s2510 = smul.addr %s2509, 512
        %s2511 = scalar_lea.vmem [#allocation2], %s2510
        // Predicated region
        $region33: #{conv2d_fused.1} parent=31 // pred_check
          %p2512 = pneg %p127
        $region34: #{conv2d_fused.1} parent=31 // pred_check_branch
          %2514 = sbr.rel (%p2512) target = $region36
        $region35: #{conv2d_fused.1} parent=31 // pred_region
          %s2515 = smul.u32 128, %s21
          %2517 = vsyncadd %s2508, 0
          %s2518 = sadd.s32 %s22, %s2515
          %s2519 = smul.addr %s2518, 4
          %s2520 = scalar_lea.hbm %s3, %s2519
          %s2521 = sshll.u32 %s2511, 4
          %s2522 = int_to_ptr.vmem [resolvable:$true] %s2521
          %s2523 = sshll.u32 %s2520, 4
          %s2524 = int_to_ptr.hbm [resolvable:$true] %s2523
          %2529 = dma.vmem_to_hbm [thread:$0]  %s2522, 8192, %s2524, %s2508, 64, 64, 4
        $region36: #{conv2d_fused.1} parent=31 // pred_fallthru
          _
      $region32: #{conv2d_fused.1} parent=5 // pred_fallthru
        _
      %p2530 = scmp.le.s32.totalorder 2, %s12
      // Predicated region
      $region37: #{conv2d_fused.1} parent=5 // pred_check
        %p2531 = pneg %p2530
      $region38: #{conv2d_fused.1} parent=5 // pred_check_branch
        %2533 = sbr.rel (%p2531) target = $region40
      $region39: #{conv2d_fused.1} parent=5 // pred_region
        %s2534 = ssub.s32 %s12, 2
        // Predicated region
        $region41: #{conv2d_fused.1} parent=39 // pred_check
          %p2535 = pneg %p133
        $region42: #{conv2d_fused.1} parent=39 // pred_check_branch
          %2537 = sbr.rel (%p2535) target = $region44
        $region43: #{conv2d_fused.1} parent=39 // pred_region
          %s2538 = sand.u32 %s118, 1
          %s2539 = scalar_lea.sflag [#allocation3], %s2538
          %s2540 = sand.u32 %s118, 1
          %s2541 = smul.addr %s2540, 512
          %s2542 = scalar_lea.vmem [#allocation2], %s2541
          %2544 = dma.done %s2539, 8192
        $region44: #{conv2d_fused.1} parent=39 // pred_fallthru
          _
      $region40: #{conv2d_fused.1} parent=5 // pred_fallthru
        _
    $region6: #{conv2d_fused.1} parent=1 // loop_footer
      %s16 = sadd.s32 1, %s12
    $region7: #{conv2d_fused.1} parent=1 // loop_footer_branch
      %11 = sbr.rel target = $region3
    $region8: #{conv2d_fused.1} parent=1 // loop_exit
      _
    %2545 = vsyncpa [#allocation3], 1
    %s2546 = scalar_lea.sflag [#allocation3], 1
    %2547 = vsyncpa %s2546, 1

</llo_original>
